<compile_context>
chip_gen: v6e
topology: v6e:2x2x1
jax: 0.10.0
libtpu: 0.0.40
codegen_flags: <defaults>
</compile_context>

<pallas_src>
import math
import numpy as np
import jax
import jax.numpy as jnp
from jax import lax
from jax.experimental import pallas as pl
from jax.experimental.pallas import tpu as pltpu

# ---------------- model dimensions (small, consistent with the module) ----------------
B = 2             # batch
G = 14            # input_dim (number of gene tokens)
T = G + 2         # +2 prefix tokens (cls + cancer-type token) -> encoding[:, 2:, :]
BT = B * T
D = 32            # transformer_dim
NHEAD = 2         # transformer_nhead
HD = D // NHEAD   # head dim
DF = 64           # transformer FFN dim
NGS = 24          # geneset-level features
NC = 16           # cellpathway-level features -> embed_dim (ref_for_task=True)
H1 = 24           # task_dense_layer = [24]
OUT = 4           # task_dim (task_type='r' -> RegDecoder)
LN_EPS = 1e-5
BN_EPS = 1e-5
BN_SCALE = 1.0 / math.sqrt(1.0 + BN_EPS)

REF_GENE_IDS = (0, 1)      # ref_gene_ids
REF_CELLTYPE_IDS = (0,)    # ref_celltype_ids (proj_level='cellpathway')

PACK = 128                 # lane-dense output width
OUT_SUBLANES = 8           # per-sample output tile is a full (8, 128) slab

# ---------------- weight slab row layout (all block offsets 8-aligned) ----------------
R_TSCALE = 0                       # (T, D)  per-token scale  (gene_emb, prefix rows = 0)
R_TBIAS = R_TSCALE + T             # (T, D)  per-token bias   (prefix tokens + pos emb)
R_QKV = R_TBIAS + T                # NHEAD * [wq_h | wk_h | wv_h], each (D, HD)
R_WO = R_QKV + NHEAD * 3 * D       # (D, D)  output projection (per-head row slices)
R_W1 = R_WO + D                    # (D, DF)
R_W2 = R_W1 + D                    # (DF, D)
R_WG = R_W2 + DF                   # (T, D)  gene-score weight (prefix rows = 0)
R_MGS = R_WG + T                   # (T, NGS) gene->geneset mask (prefix rows = 0)
R_MCP = R_MGS + T                  # (NGS, NC) geneset->cellpathway mask
R_DW1 = R_MCP + NGS                # (NC, H1)
R_DW2 = R_DW1 + NC                 # (H1, OUT)
R_BG = R_DW2 + H1                  # (T, 1)   gene-score bias (prefix rows = 0)
W_ROWS = R_BG + T                  # 464
assert W_ROWS % 8 == 0

# ---------------- bias/vector slab row layout (one vector per row, lane 0) ------------
# rows 0..5 : per-head q/k/v biases (3*h + {0,1,2}), each HD lanes
VR_BO = 6
VR_LN1G = 7
VR_LN1B = 8
VR_B1 = 9
VR_B2 = 10
VR_LN2G = 11
VR_LN2B = 12
VR_DB1 = 13
VR_BNG = 14
VR_BNB = 15
VR_DB2 = 16
V_ROWS = 24
assert V_ROWS % 8 == 0


# ---------------------------------------------------------------------------
# Fused per-sample kernel (grid = (B,))
# ---------------------------------------------------------------------------
def _ln(x, g, b):
    mu = jnp.mean(x, axis=-1, keepdims=True)
    var = jnp.mean((x - mu) ** 2, axis=-1, keepdims=True)
    return (x - mu) * lax.rsqrt(var + LN_EPS) * g + b


def compass_kernel(xval_ref, w_ref, v_ref, out_ref):
    f32 = jnp.float32
    xv = xval_ref[...]                                                     # (T, 1)

    # ---- token embedding glue (tokens never touch HBM) --------------------
    tokens = (xv * w_ref[R_TSCALE:R_TSCALE + T, 0:D]
              + w_ref[R_TBIAS:R_TBIAS + T, 0:D])                           # (T, D)

    # ---- transformer encoder layer (post-norm), per-sample attention ------
    inv_sqrt_hd = 1.0 / math.sqrt(HD)
    nt_dims = (((1,), (1,)), ((), ()))          # contract last dims: q @ k.T on the MXU
    attn = jnp.zeros((T, D), f32)
    for h in range(NHEAD):                      # static unroll; per-head weights at lane 0
        base = R_QKV + h * 3 * D
        qh = jnp.dot(tokens, w_ref[base:base + D, 0:HD],
                     preferred_element_type=f32) + v_ref[3 * h + 0:3 * h + 1, 0:HD]
        kh = jnp.dot(tokens, w_ref[base + D:base + 2 * D, 0:HD],
                     preferred_element_type=f32) + v_ref[3 * h + 1:3 * h + 2, 0:HD]
        vh = jnp.dot(tokens, w_ref[base + 2 * D:base + 3 * D, 0:HD],
                     preferred_element_type=f32) + v_ref[3 * h + 2:3 * h + 3, 0:HD]
        s = lax.dot_general(qh, kh, nt_dims, preferred_element_type=f32) * inv_sqrt_hd
        s = s - jnp.max(s, axis=-1, keepdims=True)
        p = jnp.exp(s)
        p = p / jnp.sum(p, axis=-1, keepdims=True)                         # exact softmax
        oh = jnp.dot(p, vh, preferred_element_type=f32)                    # (T, HD)
        attn = attn + jnp.dot(oh, w_ref[R_WO + h * HD:R_WO + (h + 1) * HD, 0:D],
                              preferred_element_type=f32)                  # accumulate heads
    attn = attn + v_ref[VR_BO:VR_BO + 1, 0:D]

    h1 = _ln(tokens + attn, v_ref[VR_LN1G:VR_LN1G + 1, 0:D], v_ref[VR_LN1B:VR_LN1B + 1, 0:D])
    ff = jnp.dot(h1, w_ref[R_W1:R_W1 + D, 0:DF],
                 preferred_element_type=f32) + v_ref[VR_B1:VR_B1 + 1, 0:DF]
    ff = jnp.maximum(ff, 0.0)
    ff = jnp.dot(ff, w_ref[R_W2:R_W2 + DF, 0:D],
                 preferred_element_type=f32) + v_ref[VR_B2:VR_B2 + 1, 0:D]
    enc = _ln(h1 + ff, v_ref[VR_LN2G:VR_LN2G + 1, 0:D], v_ref[VR_LN2B:VR_LN2B + 1, 0:D])

    # ---- DisentangledProjector: gene -> geneset -> cellpathway ------------
    # Prefix rows of wg / mgs / bg are zero -> equivalent to encoding[:, 2:, :]
    # without a tile-unaligned slice.
    score = (jnp.sum(enc * w_ref[R_WG:R_WG + T, 0:D], axis=-1, keepdims=True)
             + w_ref[R_BG:R_BG + T, 0:1])                                  # (T, 1)
    gs = jnp.dot(jnp.ones((1, T), f32), score * w_ref[R_MGS:R_MGS + T, 0:NGS],
                 preferred_element_type=f32)                               # (1, NGS)
    cp = jnp.dot(gs, w_ref[R_MCP:R_MCP + NGS, 0:NC], preferred_element_type=f32)  # (1, NC)

    # ---- RegDecoder: Linear -> BatchNorm1d (eval) -> ReLU -> Linear --------
    d = jnp.dot(cp, w_ref[R_DW1:R_DW1 + NC, 0:H1],
                preferred_element_type=f32) + v_ref[VR_DB1:VR_DB1 + 1, 0:H1]
    d = d * (v_ref[VR_BNG:VR_BNG + 1, 0:H1] * BN_SCALE) + v_ref[VR_BNB:VR_BNB + 1, 0:H1]
    d = jnp.maximum(d, 0.0)
    y = jnp.dot(d, w_ref[R_DW2:R_DW2 + H1, 0:OUT],
                preferred_element_type=f32) + v_ref[VR_DB2:VR_DB2 + 1, 0:OUT]  # (1, OUT)

    # ---- direct region stores into the (8, 128) per-sample output tile -----
    out_ref[...] = jnp.zeros_like(out_ref)
    out_ref[0:2, 0:D] = enc[2:2 + len(REF_GENE_IDS), :]   # gene_ref rows (ref_gene_ids 0,1)
    out_ref[2:3, 0:NC] = cp                               # cellpathway-level projection
    out_ref[3:4, 0:OUT] = y                               # task output


# ---------------------------------------------------------------------------
# Parameters (deterministic, seed 42) packed into two lane-dense slabs
# ---------------------------------------------------------------------------
def make_params():
    key = jax.random.PRNGKey(42)
    ks = jax.random.split(key, 12)
    n = lambda k, shape, fan: jax.random.normal(k, shape, jnp.float32) / math.sqrt(fan)
    z = lambda shape: jnp.zeros(shape, jnp.float32)
    o = lambda shape: jnp.ones(shape, jnp.float32)

    raw = {}
    raw["gene_emb"] = n(ks[0], (G, D), D)
    raw["prefix_tok"] = n(ks[1], (2, D), D)
    raw["pos_emb"] = 0.02 * jax.random.normal(ks[2], (T, D), jnp.float32)
    raw["wq"] = n(ks[3], (D, D), D); raw["wk"] = n(ks[4], (D, D), D)
    raw["wv"] = n(ks[5], (D, D), D); raw["wo"] = n(ks[6], (D, D), D)
    raw["bq"] = z((1, D)); raw["bk"] = z((1, D)); raw["bv"] = z((1, D)); raw["bo"] = z((1, D))
    raw["ln1g"] = o((1, D)); raw["ln1b"] = z((1, D))
    raw["w1"] = n(ks[7], (D, DF), D); raw["b1"] = z((1, DF))
    raw["w2"] = n(ks[8], (DF, D), DF); raw["b2"] = z((1, D))
    raw["ln2g"] = o((1, D)); raw["ln2b"] = z((1, D))
    raw["wg"] = n(ks[9], (G, D), D); raw["bg"] = z((1, G))
    mgs = ((jnp.arange(G)[:, None] + jnp.arange(NGS)[None, :]) % 3 == 0).astype(jnp.float32)
    raw["mgs"] = mgs / jnp.maximum(mgs.sum(0, keepdims=True), 1.0)
    mcp = ((jnp.arange(NGS)[:, None] + jnp.arange(NC)[None, :]) % 2 == 0).astype(jnp.float32)
    raw["mcp"] = mcp / jnp.maximum(mcp.sum(0, keepdims=True), 1.0)
    raw["dw1"] = n(ks[10], (NC, H1), NC); raw["db1"] = z((1, H1))
    raw["bng"] = o((1, H1)); raw["bnb"] = z((1, H1))
    raw["dw2"] = n(ks[11], (H1, OUT), H1); raw["db2"] = z((1, OUT))

    # ---- weight-matrix slab (W_ROWS, 128) ----
    W = np.zeros((W_ROWS, PACK), np.float32)

    def put(row, block):
        a = np.asarray(block, np.float32)
        W[row:row + a.shape[0], :a.shape[1]] = a

    put(R_TSCALE, np.concatenate([np.zeros((2, D), np.float32),
                                  np.asarray(raw["gene_emb"])], 0))
    put(R_TBIAS, np.concatenate([np.asarray(raw["prefix_tok"]),
                                 np.zeros((G, D), np.float32)], 0) + np.asarray(raw["pos_emb"]))
    wq, wk, wv = (np.asarray(raw[k]) for k in ("wq", "wk", "wv"))
    for h in range(NHEAD):
        base = R_QKV + h * 3 * D
        put(base, wq[:, h * HD:(h + 1) * HD])
        put(base + D, wk[:, h * HD:(h + 1) * HD])
        put(base + 2 * D, wv[:, h * HD:(h + 1) * HD])
    put(R_WO, raw["wo"])
    put(R_W1, raw["w1"])
    put(R_W2, raw["w2"])
    put(R_WG, np.concatenate([np.zeros((2, D), np.float32), np.asarray(raw["wg"])], 0))
    put(R_MGS, np.concatenate([np.zeros((2, NGS), np.float32), np.asarray(raw["mgs"])], 0))
    put(R_MCP, raw["mcp"])
    put(R_DW1, raw["dw1"])
    put(R_DW2, raw["dw2"])
    put(R_BG, np.concatenate([np.zeros((2, 1), np.float32),
                              np.asarray(raw["bg"]).reshape(G, 1)], 0))

    # ---- bias/vector slab (V_ROWS, 128) ----
    Vb = np.zeros((V_ROWS, PACK), np.float32)

    def putv(row, vec):
        a = np.asarray(vec, np.float32).reshape(-1)
        Vb[row, :a.shape[0]] = a

    bq, bk, bv = (np.asarray(raw[k]) for k in ("bq", "bk", "bv"))
    for h in range(NHEAD):
        putv(3 * h + 0, bq[0, h * HD:(h + 1) * HD])
        putv(3 * h + 1, bk[0, h * HD:(h + 1) * HD])
        putv(3 * h + 2, bv[0, h * HD:(h + 1) * HD])
    putv(VR_BO, raw["bo"]); putv(VR_LN1G, raw["ln1g"]); putv(VR_LN1B, raw["ln1b"])
    putv(VR_B1, raw["b1"]); putv(VR_B2, raw["b2"])
    putv(VR_LN2G, raw["ln2g"]); putv(VR_LN2B, raw["ln2b"])
    putv(VR_DB1, raw["db1"]); putv(VR_BNG, raw["bng"]); putv(VR_BNB, raw["bnb"])
    putv(VR_DB2, raw["db2"])

    return raw, jnp.asarray(W), jnp.asarray(Vb)


# ---------------------------------------------------------------------------
# Forward wrapper: one pallas_call, grid over batch, trivial slicing afterwards
# ---------------------------------------------------------------------------
_FLOPS_EST = 800_000        # rough per-call MXU work (B tiny samples)
_TRANS_EST = 1_500          # exp / rsqrt
_BYTES_EST = (W_ROWS + V_ROWS) * PACK * 4 + BT * 4 + B * OUT_SUBLANES * PACK * 4


@jax.jit
def compass_forward(x, wslab, vslab):
    # per-token scalar value (0 for the 2 prefix tokens, x for gene tokens), flattened
    xval = jnp.concatenate([jnp.zeros((B, 2), jnp.float32), x], axis=1).reshape(BT, 1)
    packed = pl.pallas_call(
        compass_kernel,
        out_shape=jax.ShapeDtypeStruct((B * OUT_SUBLANES, PACK), jnp.float32),
        grid=(B,),
        in_specs=[
            pl.BlockSpec((T, 1), lambda b: (b, 0)),            # per-sample token values
            pl.BlockSpec((W_ROWS, PACK), lambda b: (0, 0)),    # weight slab (resident)
            pl.BlockSpec((V_ROWS, PACK), lambda b: (0, 0)),    # bias slab (resident)
        ],
        out_specs=pl.BlockSpec((OUT_SUBLANES, PACK), lambda b: (b, 0)),
        compiler_params=pltpu.CompilerParams(dimension_semantics=("parallel",)),
        cost_estimate=pl.CostEstimate(flops=_FLOPS_EST, transcendentals=_TRANS_EST,
                                      bytes_accessed=_BYTES_EST),
    )(xval, wslab, vslab)

    packed = packed.reshape(B, OUT_SUBLANES, PACK)
    gene_ref = packed[:, 0:len(REF_GENE_IDS), 0:D]             # encoding[:, 2+ref_gene_ids, :]
    embedding = packed[:, len(REF_GENE_IDS), 0:NC]             # cellpathway-level projection
    y = packed[:, len(REF_GENE_IDS) + 1, 0:OUT]
    emb_ref = embedding[:, jnp.array(REF_CELLTYPE_IDS)]
    return (embedding, (gene_ref, emb_ref)), y


# ---------------------------------------------------------------------------
# Pure-JAX reference (same math, unfused, full-f32 matmuls) for a tolerance check
# ---------------------------------------------------------------------------
def reference_forward(x, raw):
    hp = jax.lax.Precision.HIGHEST
    mm = lambda a, b: jnp.matmul(a, b, precision=hp)

    emb = x[:, :, None] * raw["gene_emb"][None]
    prefix = jnp.broadcast_to(raw["prefix_tok"][None], (B, 2, D))
    tok = jnp.concatenate([prefix, emb], axis=1) + raw["pos_emb"][None]    # (B, T, D)

    q = mm(tok, raw["wq"]) + raw["bq"]
    k = mm(tok, raw["wk"]) + raw["bk"]
    v = mm(tok, raw["wv"]) + raw["bv"]
    heads = []
    for h in range(NHEAD):
        qh = q[..., h * HD:(h + 1) * HD]
        kh = k[..., h * HD:(h + 1) * HD]
        vh = v[..., h * HD:(h + 1) * HD]
        s = jnp.einsum("btd,bsd->bts", qh, kh, precision=hp) / math.sqrt(HD)
        p = jax.nn.softmax(s, axis=-1)
        heads.append(jnp.einsum("bts,bsd->btd", p, vh, precision=hp))
    attn = mm(jnp.concatenate(heads, axis=-1), raw["wo"]) + raw["bo"]

    def ln(u, g, b):
        mu = u.mean(-1, keepdims=True)
        var = ((u - mu) ** 2).mean(-1, keepdims=True)
        return (u - mu) / jnp.sqrt(var + LN_EPS) * g + b

    h1 = ln(tok + attn, raw["ln1g"], raw["ln1b"])
    ff = mm(jnp.maximum(mm(h1, raw["w1"]) + raw["b1"], 0.0), raw["w2"]) + raw["b2"]
    enc = ln(h1 + ff, raw["ln2g"], raw["ln2b"])                            # (B, T, D)

    gene_enc = enc[:, 2:, :]
    score = jnp.sum(gene_enc * raw["wg"][None], axis=-1) + raw["bg"]       # (B, G)
    gs = mm(score, raw["mgs"])
    cp = mm(gs, raw["mcp"])

    d = mm(cp, raw["dw1"]) + raw["db1"]
    d = d * (raw["bng"] / jnp.sqrt(1.0 + BN_EPS)) + raw["bnb"]
    d = jnp.maximum(d, 0.0)
    y = mm(d, raw["dw2"]) + raw["db2"]

    embedding = cp
    emb_ref = embedding[:, list(REF_CELLTYPE_IDS)]
    gene_ref = gene_enc[:, list(REF_GENE_IDS), :]
    return embedding, gene_ref, emb_ref, y


if __name__ == "__main__":
    raw, wslab, vslab = make_params()
    x = jax.random.normal(jax.random.PRNGKey(0), (B, G), jnp.float32)

    (embedding, (gene_ref, emb_ref)), y = compass_forward(x, wslab, vslab)
    jax.block_until_ready((embedding, gene_ref, emb_ref, y))

    assert embedding.shape == (B, NC)
    assert gene_ref.shape == (B, len(REF_GENE_IDS), D)
    assert emb_ref.shape == (B, len(REF_CELLTYPE_IDS))
    assert y.shape == (B, OUT)

    # tolerance check vs pure-JAX reference (softmax is exact now; headroom only for
    # MXU-vs-XLA f32 matmul pass/ordering differences)
    ref_emb, ref_gref, ref_eref, ref_y = reference_forward(x, raw)
    for name, got, ref in (("embedding", embedding, ref_emb),
                           ("gene_ref", gene_ref, ref_gref),
                           ("emb_ref", emb_ref, ref_eref),
                           ("y", y, ref_y)):
        assert bool(jnp.allclose(got, ref, atol=5e-3, rtol=5e-3)), (
            name, float(jnp.max(jnp.abs(got - ref))))

    print("KERNEL_OK")
</pallas_src>

<mosaic_0001>
module attributes {stable_mosaic.version = 11 : i64} {
  func.func @compass_kernel(%arg0: i32, %arg1: memref<16x1xf32, #tpu.memory_space<vmem>>, %arg2: memref<464x128xf32, #tpu.memory_space<vmem>>, %arg3: memref<24x128xf32, #tpu.memory_space<vmem>>, %arg4: memref<8x128xf32, #tpu.memory_space<vmem>>) attributes {dimension_semantics = [#tpu.dimension_semantics<parallel>], iteration_bounds = array<i64: 2>, scalar_prefetch = 0 : i64, scratch_operands = 0 : i64, tpu.core_type = #tpu.core_type<tc>, window_params = [{transform_indices = @transform_0, window_bounds = array<i64: 16, 1>}, {pipeline_mode = #tpu.pipeline_mode<synchronous>, transform_indices = @transform_1, window_bounds = array<i64: 464, 128>}, {pipeline_mode = #tpu.pipeline_mode<synchronous>, transform_indices = @transform_2, window_bounds = array<i64: 24, 128>}, {transform_indices = @transform_3, window_bounds = array<i64: 8, 128>}]} {
    %c0 = arith.constant 0 : index
    %c0_0 = arith.constant 0 : index
    %0 = vector.load %arg1[%c0, %c0_0] : memref<16x1xf32, #tpu.memory_space<vmem>>, vector<16x1xf32>
    %c0_1 = arith.constant 0 : index
    %c0_2 = arith.constant 0 : index
    %1 = vector.load %arg2[%c0_1, %c0_2] : memref<464x128xf32, #tpu.memory_space<vmem>>, vector<16x32xf32>
    %2 = vector.broadcast %0 : vector<16x1xf32> to vector<16x32xf32>
    %3 = arith.mulf %2, %1 : vector<16x32xf32>
    %c16 = arith.constant 16 : index
    %c0_3 = arith.constant 0 : index
    %4 = vector.load %arg2[%c16, %c0_3] : memref<464x128xf32, #tpu.memory_space<vmem>>, vector<16x32xf32>
    %5 = arith.addf %3, %4 : vector<16x32xf32>
    %cst = arith.constant 0.000000e+00 : f32
    %6 = vector.broadcast %cst : f32 to vector<16x32xf32>
    %c32 = arith.constant 32 : index
    %c0_4 = arith.constant 0 : index
    %7 = vector.load %arg2[%c32, %c0_4] : memref<464x128xf32, #tpu.memory_space<vmem>>, vector<32x16xf32>
    %cst_5 = arith.constant dense<0.000000e+00> : vector<16x16xf32>
    %8 = tpu.matmul %5, %7, %cst_5 {dimension_numbers = #tpu.dot_dimension_numbers<[1], [0], [0], [1], [0, 0, 1, 1], [], []>} : vector<16x32xf32>, vector<32x16xf32>, vector<16x16xf32> -> vector<16x16xf32>
    %c0_6 = arith.constant 0 : index
    %c0_7 = arith.constant 0 : index
    %9 = vector.load %arg3[%c0_6, %c0_7] : memref<24x128xf32, #tpu.memory_space<vmem>>, vector<1x16xf32>
    %10 = vector.broadcast %9 : vector<1x16xf32> to vector<16x16xf32>
    %11 = arith.addf %8, %10 : vector<16x16xf32>
    %c64 = arith.constant 64 : index
    %c0_8 = arith.constant 0 : index
    %12 = vector.load %arg2[%c64, %c0_8] : memref<464x128xf32, #tpu.memory_space<vmem>>, vector<32x16xf32>
    %cst_9 = arith.constant dense<0.000000e+00> : vector<16x16xf32>
    %13 = tpu.matmul %5, %12, %cst_9 {dimension_numbers = #tpu.dot_dimension_numbers<[1], [0], [0], [1], [0, 0, 1, 1], [], []>} : vector<16x32xf32>, vector<32x16xf32>, vector<16x16xf32> -> vector<16x16xf32>
    %c1 = arith.constant 1 : index
    %c0_10 = arith.constant 0 : index
    %14 = vector.load %arg3[%c1, %c0_10] : memref<24x128xf32, #tpu.memory_space<vmem>>, vector<1x16xf32>
    %15 = vector.broadcast %14 : vector<1x16xf32> to vector<16x16xf32>
    %16 = arith.addf %13, %15 : vector<16x16xf32>
    %c96 = arith.constant 96 : index
    %c0_11 = arith.constant 0 : index
    %17 = vector.load %arg2[%c96, %c0_11] : memref<464x128xf32, #tpu.memory_space<vmem>>, vector<32x16xf32>
    %cst_12 = arith.constant dense<0.000000e+00> : vector<16x16xf32>
    %18 = tpu.matmul %5, %17, %cst_12 {dimension_numbers = #tpu.dot_dimension_numbers<[1], [0], [0], [1], [0, 0, 1, 1], [], []>} : vector<16x32xf32>, vector<32x16xf32>, vector<16x16xf32> -> vector<16x16xf32>
    %c2 = arith.constant 2 : index
    %c0_13 = arith.constant 0 : index
    %19 = vector.load %arg3[%c2, %c0_13] : memref<24x128xf32, #tpu.memory_space<vmem>>, vector<1x16xf32>
    %20 = vector.broadcast %19 : vector<1x16xf32> to vector<16x16xf32>
    %21 = arith.addf %18, %20 : vector<16x16xf32>
    %cst_14 = arith.constant dense<0.000000e+00> : vector<16x16xf32>
    %22 = tpu.matmul %11, %16, %cst_14 {dimension_numbers = #tpu.dot_dimension_numbers<[1], [1], [0], [0], [0, 0, 1, 0], [], []>} : vector<16x16xf32>, vector<16x16xf32>, vector<16x16xf32> -> vector<16x16xf32>
    %cst_15 = arith.constant 2.500000e-01 : f32
    %23 = vector.broadcast %cst_15 : f32 to vector<16x16xf32>
    %24 = arith.mulf %22, %23 : vector<16x16xf32>
    %cst_16 = arith.constant dense<0xFF800000> : vector<16xf32>
    %25 = vector.multi_reduction <maximumf>, %24, %cst_16 [1] : vector<16x16xf32> to vector<16xf32>
    %26 = vector.shape_cast %25 : vector<16xf32> to vector<16x1xf32>
    %27 = vector.broadcast %26 : vector<16x1xf32> to vector<16x16xf32>
    %28 = arith.subf %24, %27 : vector<16x16xf32>
    %29 = math.exp %28 : vector<16x16xf32>
    %cst_17 = arith.constant dense<0.000000e+00> : vector<16xf32>
    %30 = vector.multi_reduction <add>, %29, %cst_17 [1] : vector<16x16xf32> to vector<16xf32>
    %31 = vector.shape_cast %30 : vector<16xf32> to vector<16x1xf32>
    %32 = vector.broadcast %31 : vector<16x1xf32> to vector<16x16xf32>
    %33 = arith.divf %29, %32 : vector<16x16xf32>
    %cst_18 = arith.constant dense<0.000000e+00> : vector<16x16xf32>
    %34 = tpu.matmul %33, %21, %cst_18 {dimension_numbers = #tpu.dot_dimension_numbers<[1], [0], [0], [1], [0, 0, 1, 1], [], []>} : vector<16x16xf32>, vector<16x16xf32>, vector<16x16xf32> -> vector<16x16xf32>
    %c224 = arith.constant 224 : index
    %c0_19 = arith.constant 0 : index
    %35 = vector.load %arg2[%c224, %c0_19] : memref<464x128xf32, #tpu.memory_space<vmem>>, vector<16x32xf32>
    %cst_20 = arith.constant dense<0.000000e+00> : vector<16x32xf32>
    %36 = tpu.matmul %34, %35, %cst_20 {dimension_numbers = #tpu.dot_dimension_numbers<[1], [0], [0], [1], [0, 0, 1, 1], [], []>} : vector<16x16xf32>, vector<16x32xf32>, vector<16x32xf32> -> vector<16x32xf32>
    %37 = arith.addf %6, %36 : vector<16x32xf32>
    %c128 = arith.constant 128 : index
    %c0_21 = arith.constant 0 : index
    %38 = vector.load %arg2[%c128, %c0_21] : memref<464x128xf32, #tpu.memory_space<vmem>>, vector<32x16xf32>
    %cst_22 = arith.constant dense<0.000000e+00> : vector<16x16xf32>
    %39 = tpu.matmul %5, %38, %cst_22 {dimension_numbers = #tpu.dot_dimension_numbers<[1], [0], [0], [1], [0, 0, 1, 1], [], []>} : vector<16x32xf32>, vector<32x16xf32>, vector<16x16xf32> -> vector<16x16xf32>
    %c3 = arith.constant 3 : index
    %c0_23 = arith.constant 0 : index
    %40 = vector.load %arg3[%c3, %c0_23] : memref<24x128xf32, #tpu.memory_space<vmem>>, vector<1x16xf32>
    %41 = vector.broadcast %40 : vector<1x16xf32> to vector<16x16xf32>
    %42 = arith.addf %39, %41 : vector<16x16xf32>
    %c160 = arith.constant 160 : index
    %c0_24 = arith.constant 0 : index
    %43 = vector.load %arg2[%c160, %c0_24] : memref<464x128xf32, #tpu.memory_space<vmem>>, vector<32x16xf32>
    %cst_25 = arith.constant dense<0.000000e+00> : vector<16x16xf32>
    %44 = tpu.matmul %5, %43, %cst_25 {dimension_numbers = #tpu.dot_dimension_numbers<[1], [0], [0], [1], [0, 0, 1, 1], [], []>} : vector<16x32xf32>, vector<32x16xf32>, vector<16x16xf32> -> vector<16x16xf32>
    %c4 = arith.constant 4 : index
    %c0_26 = arith.constant 0 : index
    %45 = vector.load %arg3[%c4, %c0_26] : memref<24x128xf32, #tpu.memory_space<vmem>>, vector<1x16xf32>
    %46 = vector.broadcast %45 : vector<1x16xf32> to vector<16x16xf32>
    %47 = arith.addf %44, %46 : vector<16x16xf32>
    %c192 = arith.constant 192 : index
    %c0_27 = arith.constant 0 : index
    %48 = vector.load %arg2[%c192, %c0_27] : memref<464x128xf32, #tpu.memory_space<vmem>>, vector<32x16xf32>
    %cst_28 = arith.constant dense<0.000000e+00> : vector<16x16xf32>
    %49 = tpu.matmul %5, %48, %cst_28 {dimension_numbers = #tpu.dot_dimension_numbers<[1], [0], [0], [1], [0, 0, 1, 1], [], []>} : vector<16x32xf32>, vector<32x16xf32>, vector<16x16xf32> -> vector<16x16xf32>
    %c5 = arith.constant 5 : index
    %c0_29 = arith.constant 0 : index
    %50 = vector.load %arg3[%c5, %c0_29] : memref<24x128xf32, #tpu.memory_space<vmem>>, vector<1x16xf32>
    %51 = vector.broadcast %50 : vector<1x16xf32> to vector<16x16xf32>
    %52 = arith.addf %49, %51 : vector<16x16xf32>
    %cst_30 = arith.constant dense<0.000000e+00> : vector<16x16xf32>
    %53 = tpu.matmul %42, %47, %cst_30 {dimension_numbers = #tpu.dot_dimension_numbers<[1], [1], [0], [0], [0, 0, 1, 0], [], []>} : vector<16x16xf32>, vector<16x16xf32>, vector<16x16xf32> -> vector<16x16xf32>
    %cst_31 = arith.constant 2.500000e-01 : f32
    %54 = vector.broadcast %cst_31 : f32 to vector<16x16xf32>
    %55 = arith.mulf %53, %54 : vector<16x16xf32>
    %cst_32 = arith.constant dense<0xFF800000> : vector<16xf32>
    %56 = vector.multi_reduction <maximumf>, %55, %cst_32 [1] : vector<16x16xf32> to vector<16xf32>
    %57 = vector.shape_cast %56 : vector<16xf32> to vector<16x1xf32>
    %58 = vector.broadcast %57 : vector<16x1xf32> to vector<16x16xf32>
    %59 = arith.subf %55, %58 : vector<16x16xf32>
    %60 = math.exp %59 : vector<16x16xf32>
    %cst_33 = arith.constant dense<0.000000e+00> : vector<16xf32>
    %61 = vector.multi_reduction <add>, %60, %cst_33 [1] : vector<16x16xf32> to vector<16xf32>
    %62 = vector.shape_cast %61 : vector<16xf32> to vector<16x1xf32>
    %63 = vector.broadcast %62 : vector<16x1xf32> to vector<16x16xf32>
    %64 = arith.divf %60, %63 : vector<16x16xf32>
    %cst_34 = arith.constant dense<0.000000e+00> : vector<16x16xf32>
    %65 = tpu.matmul %64, %52, %cst_34 {dimension_numbers = #tpu.dot_dimension_numbers<[1], [0], [0], [1], [0, 0, 1, 1], [], []>} : vector<16x16xf32>, vector<16x16xf32>, vector<16x16xf32> -> vector<16x16xf32>
    %c240 = arith.constant 240 : index
    %c0_35 = arith.constant 0 : index
    %66 = vector.load %arg2[%c240, %c0_35] : memref<464x128xf32, #tpu.memory_space<vmem>>, vector<16x32xf32>
    %cst_36 = arith.constant dense<0.000000e+00> : vector<16x32xf32>
    %67 = tpu.matmul %65, %66, %cst_36 {dimension_numbers = #tpu.dot_dimension_numbers<[1], [0], [0], [1], [0, 0, 1, 1], [], []>} : vector<16x16xf32>, vector<16x32xf32>, vector<16x32xf32> -> vector<16x32xf32>
    %68 = arith.addf %37, %67 : vector<16x32xf32>
    %c6 = arith.constant 6 : index
    %c0_37 = arith.constant 0 : index
    %69 = vector.load %arg3[%c6, %c0_37] : memref<24x128xf32, #tpu.memory_space<vmem>>, vector<1x32xf32>
    %70 = vector.broadcast %69 : vector<1x32xf32> to vector<16x32xf32>
    %71 = arith.addf %68, %70 : vector<16x32xf32>
    %72 = arith.addf %5, %71 : vector<16x32xf32>
    %c7 = arith.constant 7 : index
    %c0_38 = arith.constant 0 : index
    %73 = vector.load %arg3[%c7, %c0_38] : memref<24x128xf32, #tpu.memory_space<vmem>>, vector<1x32xf32>
    %c8 = arith.constant 8 : index
    %c0_39 = arith.constant 0 : index
    %74 = vector.load %arg3[%c8, %c0_39] : memref<24x128xf32, #tpu.memory_space<vmem>>, vector<1x32xf32>
    %cst_40 = arith.constant dense<0.000000e+00> : vector<16xf32>
    %75 = vector.multi_reduction <add>, %72, %cst_40 [1] : vector<16x32xf32> to vector<16xf32>
    %76 = vector.shape_cast %75 : vector<16xf32> to vector<16x1xf32>
    %cst_41 = arith.constant 3.200000e+01 : f32
    %77 = vector.broadcast %cst_41 : f32 to vector<16x1xf32>
    %78 = arith.divf %76, %77 : vector<16x1xf32>
    %79 = vector.broadcast %78 : vector<16x1xf32> to vector<16x32xf32>
    %80 = arith.subf %72, %79 : vector<16x32xf32>
    %81 = arith.mulf %80, %80 : vector<16x32xf32>
    %cst_42 = arith.constant dense<0.000000e+00> : vector<16xf32>
    %82 = vector.multi_reduction <add>, %81, %cst_42 [1] : vector<16x32xf32> to vector<16xf32>
    %83 = vector.shape_cast %82 : vector<16xf32> to vector<16x1xf32>
    %cst_43 = arith.constant 3.200000e+01 : f32
    %84 = vector.broadcast %cst_43 : f32 to vector<16x1xf32>
    %85 = arith.divf %83, %84 : vector<16x1xf32>
    %86 = vector.broadcast %78 : vector<16x1xf32> to vector<16x32xf32>
    %87 = arith.subf %72, %86 : vector<16x32xf32>
    %cst_44 = arith.constant 9.99999974E-6 : f32
    %88 = vector.broadcast %cst_44 : f32 to vector<16x1xf32>
    %89 = arith.addf %85, %88 : vector<16x1xf32>
    %90 = math.rsqrt %89 : vector<16x1xf32>
    %91 = vector.broadcast %90 : vector<16x1xf32> to vector<16x32xf32>
    %92 = arith.mulf %87, %91 : vector<16x32xf32>
    %93 = vector.broadcast %73 : vector<1x32xf32> to vector<16x32xf32>
    %94 = arith.mulf %92, %93 : vector<16x32xf32>
    %95 = vector.broadcast %74 : vector<1x32xf32> to vector<16x32xf32>
    %96 = arith.addf %94, %95 : vector<16x32xf32>
    %c256 = arith.constant 256 : index
    %c0_45 = arith.constant 0 : index
    %97 = vector.load %arg2[%c256, %c0_45] : memref<464x128xf32, #tpu.memory_space<vmem>>, vector<32x64xf32>
    %cst_46 = arith.constant dense<0.000000e+00> : vector<16x64xf32>
    %98 = tpu.matmul %96, %97, %cst_46 {dimension_numbers = #tpu.dot_dimension_numbers<[1], [0], [0], [1], [0, 0, 1, 1], [], []>} : vector<16x32xf32>, vector<32x64xf32>, vector<16x64xf32> -> vector<16x64xf32>
    %c9 = arith.constant 9 : index
    %c0_47 = arith.constant 0 : index
    %99 = vector.load %arg3[%c9, %c0_47] : memref<24x128xf32, #tpu.memory_space<vmem>>, vector<1x64xf32>
    %100 = vector.broadcast %99 : vector<1x64xf32> to vector<16x64xf32>
    %101 = arith.addf %98, %100 : vector<16x64xf32>
    %cst_48 = arith.constant 0.000000e+00 : f32
    %102 = vector.broadcast %cst_48 : f32 to vector<16x64xf32>
    %103 = arith.maximumf %101, %102 : vector<16x64xf32>
    %c288 = arith.constant 288 : index
    %c0_49 = arith.constant 0 : index
    %104 = vector.load %arg2[%c288, %c0_49] : memref<464x128xf32, #tpu.memory_space<vmem>>, vector<64x32xf32>
    %cst_50 = arith.constant dense<0.000000e+00> : vector<16x32xf32>
    %105 = tpu.matmul %103, %104, %cst_50 {dimension_numbers = #tpu.dot_dimension_numbers<[1], [0], [0], [1], [0, 0, 1, 1], [], []>} : vector<16x64xf32>, vector<64x32xf32>, vector<16x32xf32> -> vector<16x32xf32>
    %c10 = arith.constant 10 : index
    %c0_51 = arith.constant 0 : index
    %106 = vector.load %arg3[%c10, %c0_51] : memref<24x128xf32, #tpu.memory_space<vmem>>, vector<1x32xf32>
    %107 = vector.broadcast %106 : vector<1x32xf32> to vector<16x32xf32>
    %108 = arith.addf %105, %107 : vector<16x32xf32>
    %109 = arith.addf %96, %108 : vector<16x32xf32>
    %c11 = arith.constant 11 : index
    %c0_52 = arith.constant 0 : index
    %110 = vector.load %arg3[%c11, %c0_52] : memref<24x128xf32, #tpu.memory_space<vmem>>, vector<1x32xf32>
    %c12 = arith.constant 12 : index
    %c0_53 = arith.constant 0 : index
    %111 = vector.load %arg3[%c12, %c0_53] : memref<24x128xf32, #tpu.memory_space<vmem>>, vector<1x32xf32>
    %cst_54 = arith.constant dense<0.000000e+00> : vector<16xf32>
    %112 = vector.multi_reduction <add>, %109, %cst_54 [1] : vector<16x32xf32> to vector<16xf32>
    %113 = vector.shape_cast %112 : vector<16xf32> to vector<16x1xf32>
    %cst_55 = arith.constant 3.200000e+01 : f32
    %114 = vector.broadcast %cst_55 : f32 to vector<16x1xf32>
    %115 = arith.divf %113, %114 : vector<16x1xf32>
    %116 = vector.broadcast %115 : vector<16x1xf32> to vector<16x32xf32>
    %117 = arith.subf %109, %116 : vector<16x32xf32>
    %118 = arith.mulf %117, %117 : vector<16x32xf32>
    %cst_56 = arith.constant dense<0.000000e+00> : vector<16xf32>
    %119 = vector.multi_reduction <add>, %118, %cst_56 [1] : vector<16x32xf32> to vector<16xf32>
    %120 = vector.shape_cast %119 : vector<16xf32> to vector<16x1xf32>
    %cst_57 = arith.constant 3.200000e+01 : f32
    %121 = vector.broadcast %cst_57 : f32 to vector<16x1xf32>
    %122 = arith.divf %120, %121 : vector<16x1xf32>
    %123 = vector.broadcast %115 : vector<16x1xf32> to vector<16x32xf32>
    %124 = arith.subf %109, %123 : vector<16x32xf32>
    %cst_58 = arith.constant 9.99999974E-6 : f32
    %125 = vector.broadcast %cst_58 : f32 to vector<16x1xf32>
    %126 = arith.addf %122, %125 : vector<16x1xf32>
    %127 = math.rsqrt %126 : vector<16x1xf32>
    %128 = vector.broadcast %127 : vector<16x1xf32> to vector<16x32xf32>
    %129 = arith.mulf %124, %128 : vector<16x32xf32>
    %130 = vector.broadcast %110 : vector<1x32xf32> to vector<16x32xf32>
    %131 = arith.mulf %129, %130 : vector<16x32xf32>
    %132 = vector.broadcast %111 : vector<1x32xf32> to vector<16x32xf32>
    %133 = arith.addf %131, %132 : vector<16x32xf32>
    %c352 = arith.constant 352 : index
    %c0_59 = arith.constant 0 : index
    %134 = vector.load %arg2[%c352, %c0_59] : memref<464x128xf32, #tpu.memory_space<vmem>>, vector<16x32xf32>
    %135 = arith.mulf %133, %134 : vector<16x32xf32>
    %cst_60 = arith.constant dense<0.000000e+00> : vector<16xf32>
    %136 = vector.multi_reduction <add>, %135, %cst_60 [1] : vector<16x32xf32> to vector<16xf32>
    %137 = vector.shape_cast %136 : vector<16xf32> to vector<16x1xf32>
    %c448 = arith.constant 448 : index
    %c0_61 = arith.constant 0 : index
    %138 = vector.load %arg2[%c448, %c0_61] : memref<464x128xf32, #tpu.memory_space<vmem>>, vector<16x1xf32>
    %139 = arith.addf %137, %138 : vector<16x1xf32>
    %cst_62 = arith.constant 1.000000e+00 : f32
    %140 = vector.broadcast %cst_62 : f32 to vector<1x16xf32>
    %c368 = arith.constant 368 : index
    %c0_63 = arith.constant 0 : index
    %141 = vector.load %arg2[%c368, %c0_63] : memref<464x128xf32, #tpu.memory_space<vmem>>, vector<16x24xf32>
    %142 = vector.broadcast %139 : vector<16x1xf32> to vector<16x24xf32>
    %143 = arith.mulf %142, %141 : vector<16x24xf32>
    %cst_64 = arith.constant dense<0.000000e+00> : vector<1x24xf32>
    %144 = tpu.matmul %140, %143, %cst_64 {dimension_numbers = #tpu.dot_dimension_numbers<[1], [0], [0], [1], [0, 0, 1, 1], [], []>} : vector<1x16xf32>, vector<16x24xf32>, vector<1x24xf32> -> vector<1x24xf32>
    %c384 = arith.constant 384 : index
    %c0_65 = arith.constant 0 : index
    %145 = vector.load %arg2[%c384, %c0_65] : memref<464x128xf32, #tpu.memory_space<vmem>>, vector<24x16xf32>
    %cst_66 = arith.constant dense<0.000000e+00> : vector<1x16xf32>
    %146 = tpu.matmul %144, %145, %cst_66 {dimension_numbers = #tpu.dot_dimension_numbers<[1], [0], [0], [1], [0, 0, 1, 1], [], []>} : vector<1x24xf32>, vector<24x16xf32>, vector<1x16xf32> -> vector<1x16xf32>
    %c408 = arith.constant 408 : index
    %c0_67 = arith.constant 0 : index
    %147 = vector.load %arg2[%c408, %c0_67] : memref<464x128xf32, #tpu.memory_space<vmem>>, vector<16x24xf32>
    %cst_68 = arith.constant dense<0.000000e+00> : vector<1x24xf32>
    %148 = tpu.matmul %146, %147, %cst_68 {dimension_numbers = #tpu.dot_dimension_numbers<[1], [0], [0], [1], [0, 0, 1, 1], [], []>} : vector<1x16xf32>, vector<16x24xf32>, vector<1x24xf32> -> vector<1x24xf32>
    %c13 = arith.constant 13 : index
    %c0_69 = arith.constant 0 : index
    %149 = vector.load %arg3[%c13, %c0_69] : memref<24x128xf32, #tpu.memory_space<vmem>>, vector<1x24xf32>
    %150 = arith.addf %148, %149 : vector<1x24xf32>
    %c14 = arith.constant 14 : index
    %c0_70 = arith.constant 0 : index
    %151 = vector.load %arg3[%c14, %c0_70] : memref<24x128xf32, #tpu.memory_space<vmem>>, vector<1x24xf32>
    %cst_71 = arith.constant 0.999994993 : f32
    %152 = vector.broadcast %cst_71 : f32 to vector<1x24xf32>
    %153 = arith.mulf %151, %152 : vector<1x24xf32>
    %154 = arith.mulf %150, %153 : vector<1x24xf32>
    %c15 = arith.constant 15 : index
    %c0_72 = arith.constant 0 : index
    %155 = vector.load %arg3[%c15, %c0_72] : memref<24x128xf32, #tpu.memory_space<vmem>>, vector<1x24xf32>
    %156 = arith.addf %154, %155 : vector<1x24xf32>
    %cst_73 = arith.constant 0.000000e+00 : f32
    %157 = vector.broadcast %cst_73 : f32 to vector<1x24xf32>
    %158 = arith.maximumf %156, %157 : vector<1x24xf32>
    %c424 = arith.constant 424 : index
    %c0_74 = arith.constant 0 : index
    %159 = vector.load %arg2[%c424, %c0_74] : memref<464x128xf32, #tpu.memory_space<vmem>>, vector<24x4xf32>
    %cst_75 = arith.constant dense<0.000000e+00> : vector<1x4xf32>
    %160 = tpu.matmul %158, %159, %cst_75 {dimension_numbers = #tpu.dot_dimension_numbers<[1], [0], [0], [1], [0, 0, 1, 1], [], []>} : vector<1x24xf32>, vector<24x4xf32>, vector<1x4xf32> -> vector<1x4xf32>
    %c16_76 = arith.constant 16 : index
    %c0_77 = arith.constant 0 : index
    %161 = vector.load %arg3[%c16_76, %c0_77] : memref<24x128xf32, #tpu.memory_space<vmem>>, vector<1x4xf32>
    %162 = arith.addf %160, %161 : vector<1x4xf32>
    %cst_78 = arith.constant 0.000000e+00 : f32
    %163 = vector.broadcast %cst_78 : f32 to vector<8x128xf32>
    %c0_79 = arith.constant 0 : index
    %c0_80 = arith.constant 0 : index
    %164 = vector.load %arg4[%c0_79, %c0_80] : memref<8x128xf32, #tpu.memory_space<vmem>>, vector<8x128xf32>
    tpu.vector_store %arg4[%c0_79, %c0_80], %163 {strides = array<i32>} : memref<8x128xf32, #tpu.memory_space<vmem>>, vector<8x128xf32>,
    %165 = vector.extract_strided_slice %133 {offsets = [2, 0], sizes = [2, 32], strides = [1, 1]} : vector<16x32xf32> to vector<2x32xf32>
    %c0_81 = arith.constant 0 : index
    %c0_82 = arith.constant 0 : index
    %166 = vector.load %arg4[%c0_81, %c0_82] : memref<8x128xf32, #tpu.memory_space<vmem>>, vector<2x32xf32>
    tpu.vector_store %arg4[%c0_81, %c0_82], %165 {strides = array<i32>} : memref<8x128xf32, #tpu.memory_space<vmem>>, vector<2x32xf32>,
    %c2_83 = arith.constant 2 : index
    %c0_84 = arith.constant 0 : index
    %167 = vector.load %arg4[%c2_83, %c0_84] : memref<8x128xf32, #tpu.memory_space<vmem>>, vector<1x16xf32>
    tpu.vector_store %arg4[%c2_83, %c0_84], %146 {strides = array<i32>} : memref<8x128xf32, #tpu.memory_space<vmem>>, vector<1x16xf32>,
    %c3_85 = arith.constant 3 : index
    %c0_86 = arith.constant 0 : index
    %168 = vector.load %arg4[%c3_85, %c0_86] : memref<8x128xf32, #tpu.memory_space<vmem>>, vector<1x4xf32>
    tpu.vector_store %arg4[%c3_85, %c0_86], %162 {strides = array<i32>} : memref<8x128xf32, #tpu.memory_space<vmem>>, vector<1x4xf32>,
    return
  }
  func.func @transform_0(%arg0: i32) -> (i32, i32) {
    %c0_i32 = arith.constant 0 : i32
    %c0_i32_0 = arith.constant 0 : i32
    return %arg0, %c0_i32 : i32, i32
  }
  func.func @transform_1(%arg0: i32) -> (i32, i32) {
    %c0_i32 = arith.constant 0 : i32
    %c0_i32_0 = arith.constant 0 : i32
    %c0_i32_1 = arith.constant 0 : i32
    return %c0_i32, %c0_i32_0 : i32, i32
  }
  func.func @transform_2(%arg0: i32) -> (i32, i32) {
    %c0_i32 = arith.constant 0 : i32
    %c0_i32_0 = arith.constant 0 : i32
    %c0_i32_1 = arith.constant 0 : i32
    return %c0_i32, %c0_i32_0 : i32, i32
  }
  func.func @transform_3(%arg0: i32) -> (i32, i32) {
    %c0_i32 = arith.constant 0 : i32
    %c0_i32_0 = arith.constant 0 : i32
    return %arg0, %c0_i32 : i32, i32
  }
}

</mosaic_0001>

<llo_original>
// kernel: compass_forward.1
$region0: #{compass_forward.1}
  #allocation0 [shape = 'u32[]', space=smem, size = 0x4, offset = 0x4, fixed_abs, tag = 'smem constant byte address 0x4 - core index']
  #allocation1 [shape = 'u32[144,128]{1,0:T(1,128)}', space=vmem, size = 0x12000, scoped, tag = 'internal scratch']
  %s0 = inlined_call_operand.vmem [shape: f32[32,1], index: 0, kind: input, shape index: {}]
  %s1 = inlined_call_operand.hbm [shape: f32[464,128], index: 1, kind: input, shape index: {}]
  %s2 = inlined_call_operand.vmem [shape: f32[24,128], index: 2, kind: input, shape index: {}]
  %s3 = inlined_call_operand.vmem [shape: f32[16,128], index: 3, kind: output, shape index: {}]
  %s4 = sld [smem:[#allocation0]]
  $region49: #{compass_forward.1} parent=0
    _
  %s6 = ssub.s32 1, %s4
  %s7 = scalar_select 0, %s6, %s4
  $region1: #{compass_forward.1} parent=0
    #allocation2 [shape = 'u8[237568]{0}', space=vmem, size = 0x3a000, scoped, tag = 'input window, operand 1, single buffered']
    #allocation3 [shape = 's32[2]{0}', space=sflag, size = 0x8, scoped, tag = 'scoped memory for compass_forward.1']
    %8 = vsyncpa [#allocation3], 0
    loop: start=0, step=1, limit=4
    $region2: #{compass_forward.1} parent=1 // loop_pre_header
      _
    $region3: #{compass_forward.1} parent=1 // loop_header
      %s10 = sphi 0, %s14
      %p11 = scmp.ge.s32.totalorder %s10, 4
      %s20 = sphi 0, %s22
      %s23 = sphi 0, %s20
      %s24 = sphi 0, %s23
      %s40 = sphi 0, %s24
      %s44 = sphi 0, %s44
      %s46 = sphi 0, %s44
      %s47 = sphi 0, %s46
      %s61 = sphi 0, %s47
      %s65 = sphi 0, %s65
      %s67 = sphi 0, %s65
      %s68 = sphi 0, %s67
      %s82 = sphi 0, %s68
      %s88 = sphi 0, %s90
      %s91 = sphi 0, %s88
      %s92 = sphi 0, %s91
      %s108 = sphi 0, %s92
    $region4: #{compass_forward.1} parent=1 // loop_header_branch
      %13 = sbr.rel (%p11) target = $region8
    $region5: #{compass_forward.1} parent=1 // loop_body
      %s15 = ssub.s32 %s10, 1
      %s16 = ssub.s32 %s10, 2
      %s17 = sadd.s32 %s10, 1
      %s18 = ssub.s32 %s10, %s17
      %p19 = scmp.eq.s32.totalorder %s18, 0
      %s21 = sadd.s32 %s20, 1
      %s22 = scalar_select %p19, %s20, %s21
      %p25 = pneg %p19
      %p26 = scmp.eq.s32.totalorder %s10, 1
      %p27 = por %p25, %p26
      %p28 = scmp.ne.s32.totalorder %s20, %s23
      %p29 = scmp.eq.s32.totalorder %s10, 0
      %p30 = por %p28, %p29
      %p31 = scmp.ne.s32.totalorder %s20, %s23
      %p32 = scmp.eq.s32.totalorder %s15, 1
      %p33 = por %p31, %p32
      %p34 = scmp.ne.s32.totalorder %s23, %s24
      %p35 = scmp.eq.s32.totalorder %s15, 0
      %p36 = por %p34, %p35
      %p37 = scmp.ne.s32.totalorder %s23, %s24
      %p38 = scmp.eq.s32.totalorder %s16, 1
      %p39 = por %p37, %p38
      %p41 = scmp.ne.s32.totalorder %s24, %s40
      %p42 = scmp.eq.s32.totalorder %s16, 0
      %p43 = por %p41, %p42
      %s45 = sadd.s32 %s44, 1
      %p48 = scmp.eq.s32.totalorder %s10, 1
      %p49 = scmp.ne.s32.totalorder %s44, %s46
      %p50 = scmp.eq.s32.totalorder %s10, 0
      %p51 = por %p49, %p50
      %p52 = scmp.ne.s32.totalorder %s44, %s46
      %p53 = scmp.eq.s32.totalorder %s15, 1
      %p54 = por %p52, %p53
      %p55 = scmp.ne.s32.totalorder %s46, %s47
      %p56 = scmp.eq.s32.totalorder %s15, 0
      %p57 = por %p55, %p56
      %p58 = scmp.ne.s32.totalorder %s46, %s47
      %p59 = scmp.eq.s32.totalorder %s16, 1
      %p60 = por %p58, %p59
      %p62 = scmp.ne.s32.totalorder %s47, %s61
      %p63 = scmp.eq.s32.totalorder %s16, 0
      %p64 = por %p62, %p63
      %s66 = sadd.s32 %s65, 1
      %p69 = scmp.eq.s32.totalorder %s10, 1
      %p70 = scmp.ne.s32.totalorder %s65, %s67
      %p71 = scmp.eq.s32.totalorder %s10, 0
      %p72 = por %p70, %p71
      %p73 = scmp.ne.s32.totalorder %s65, %s67
      %p74 = scmp.eq.s32.totalorder %s15, 1
      %p75 = por %p73, %p74
      %p76 = scmp.ne.s32.totalorder %s67, %s68
      %p77 = scmp.eq.s32.totalorder %s15, 0
      %p78 = por %p76, %p77
      %p79 = scmp.ne.s32.totalorder %s67, %s68
      %p80 = scmp.eq.s32.totalorder %s16, 1
      %p81 = por %p79, %p80
      %p83 = scmp.ne.s32.totalorder %s68, %s82
      %p84 = scmp.eq.s32.totalorder %s16, 0
      %p85 = por %p83, %p84
      %s86 = ssub.s32 %s10, %s17
      %p87 = scmp.eq.s32.totalorder %s86, 0
      %s89 = sadd.s32 %s88, 1
      %s90 = scalar_select %p87, %s88, %s89
      %p93 = pneg %p87
      %p94 = scmp.eq.s32.totalorder %s10, 1
      %p95 = por %p93, %p94
      %p96 = scmp.ne.s32.totalorder %s88, %s91
      %p97 = scmp.eq.s32.totalorder %s10, 0
      %p98 = por %p96, %p97
      %p99 = scmp.ne.s32.totalorder %s88, %s91
      %p100 = scmp.eq.s32.totalorder %s15, 1
      %p101 = por %p99, %p100
      %p102 = scmp.ne.s32.totalorder %s91, %s92
      %p103 = scmp.eq.s32.totalorder %s15, 0
      %p104 = por %p102, %p103
      %p105 = scmp.ne.s32.totalorder %s91, %s92
      %p106 = scmp.eq.s32.totalorder %s16, 1
      %p107 = por %p105, %p106
      %p109 = scmp.ne.s32.totalorder %s92, %s108
      %p110 = scmp.eq.s32.totalorder %s16, 0
      %p111 = por %p109, %p110
      %p112 = scmp.le.s32.totalorder 1, %s10
      %p113 = scmp.lt.s32.totalorder %s10, 3
      %p114 = pnand %p112, %p113
      %p115 = pneg %p114
      // Predicated region
      $region9: #{compass_forward.1} parent=5 // pred_check
        _
      $region10: #{compass_forward.1} parent=5 // pred_check_branch
        %117 = sbr.rel (%p114) target = $region12
      $region11: #{compass_forward.1} parent=5 // pred_region
        %s118 = ssub.s32 %s10, 1
        // Predicated region
        $region13: #{compass_forward.1} parent=11 // pred_check
          %p119 = pneg %p57
        $region14: #{compass_forward.1} parent=11 // pred_check_branch
          %121 = sbr.rel (%p119) target = $region16
        $region15: #{compass_forward.1} parent=11 // pred_region
          %s123 = ssub.s32 7424, 7424
          %124 = vsyncadd [#allocation3], %s123
          %s125 = sshll.u32 [#allocation2], 4
          %s126 = int_to_ptr.vmem [resolvable:$true] %s125
          %131 = dma.hbm_to_vmem [thread:$0]  %s1, 7424, %s126, [#allocation3], 128, 128, 8
        $region16: #{compass_forward.1} parent=11 // pred_fallthru
          _
        // Predicated region
        $region17: #{compass_forward.1} parent=11 // pred_check
          %p132 = pneg %p78
        $region18: #{compass_forward.1} parent=11 // pred_check_branch
          %134 = sbr.rel (%p132) target = $region20
        $region19: #{compass_forward.1} parent=11 // pred_region
          _
        $region20: #{compass_forward.1} parent=11 // pred_fallthru
          _
      $region12: #{compass_forward.1} parent=5 // pred_fallthru
        _
      %p135 = scmp.lt.s32.totalorder %s10, 2
      // Predicated region
      $region21: #{compass_forward.1} parent=5 // pred_check
        %p136 = pneg %p135
      $region22: #{compass_forward.1} parent=5 // pred_check_branch
        %138 = sbr.rel (%p136) target = $region24
      $region23: #{compass_forward.1} parent=5 // pred_region
        // Predicated region
        $region25: #{compass_forward.1} parent=23 // pred_check
          %p139 = pneg %p30
        $region26: #{compass_forward.1} parent=23 // pred_check_branch
          %141 = sbr.rel (%p139) target = $region28
        $region27: #{compass_forward.1} parent=23 // pred_region
          %s142 = smul.u32 2, %s10
          %p143 = scmp.lt.s32.totalorder %s142, 3
          %s144 = scalar_select %p143, %s142, 3
          %s145 = smul.addr %s144, 8
          %s146 = scalar_lea.vmem %s0, %s145
          %s147 = smul.u32 2, %s10
        $region28: #{compass_forward.1} parent=23 // pred_fallthru
          _
      $region24: #{compass_forward.1} parent=5 // pred_fallthru
        _
      %p148 = scmp.le.s32.totalorder 1, %s10
      %p149 = scmp.lt.s32.totalorder %s10, 3
      %p150 = pnand %p148, %p149
      %p151 = pneg %p150
      // Predicated region
      $region29: #{compass_forward.1} parent=5 // pred_check
        _
      $region30: #{compass_forward.1} parent=5 // pred_check_branch
        %153 = sbr.rel (%p150) target = $region32
      $region31: #{compass_forward.1} parent=5 // pred_region
        %s154 = ssub.s32 %s10, 1
        // Predicated region
        $region33: #{compass_forward.1} parent=31 // pred_check
          %p155 = pneg %p57
        $region34: #{compass_forward.1} parent=31 // pred_check_branch
          %157 = sbr.rel (%p155) target = $region36
        $region35: #{compass_forward.1} parent=31 // pred_region
          %158 = dma.done [#allocation3], 7424
        $region36: #{compass_forward.1} parent=31 // pred_fallthru
          _
        %s159 = smul.u32 2, %s15
        %p160 = scmp.lt.s32.totalorder %s159, 3
        %s161 = scalar_select %p160, %s159, 3
        %s162 = smul.addr %s161, 8
        %s163 = scalar_lea.vmem %s0, %s162
        %p164 = pneg %p36
        %p165 = pneg %p33
        %p166 = pneg %p57
        %p167 = pneg %p54
        %p168 = pneg %p78
        %p169 = pneg %p75
        %p170 = pneg %p104
        %p171 = pneg %p101
        %p172 = scmp.lt.s32.totalorder %s15, 1
        %s173 = scalar_select %p172, %s15, 1
        %s174 = smul.addr %s173, 8
        %s175 = scalar_lea.vmem %s3, %s174
        %s176 = smul.u32 2, %s15
        %p177 = scmp.lt.s32.totalorder %s176, 3
        %s178 = scalar_select %p177, %s176, 3
        %s179 = smul.addr %s178, 8
        %s180 = scalar_lea.vmem %s0, %s179
        %s181 = smul.u32 2, %s15
        %p182 = scmp.lt.s32.totalorder %s15, 1
        %s183 = scalar_select %p182, %s15, 1
        %s184 = smul.addr %s183, 8
        %s185 = scalar_lea.vmem %s3, %s184
        %v186 = vld [vmem:[%s180] sm:$0xff]
        %v187 = vld [vmem:[%s180 + $0x8] sm:$0xff]
        %v188 = vld [vmem:[#allocation2] sm:$0xff]
        %v189 = vld [vmem:[#allocation2 + $0x8] sm:$0xff]
        %191 = vset.pattern.permute.xlu0 0
        %192 = vperm.xlu0 %191, %v186
        %v193 = vpop.permute.xlu0 %192
        %196 = vset.pattern.permute.xlu0 0
        %197 = vperm.xlu0 %196, %v187
        %v198 = vpop.permute.xlu0 %197
        %v200 = vmul.f32 %v193, %v188
        %v201 = vmul.f32 %v198, %v189
        %v202 = vld [vmem:[#allocation2 + $0x10] sm:$0xff]
        %v203 = vld [vmem:[#allocation2 + $0x18] sm:$0xff]
        %v204 = vadd.f32 %v200, %v202
        %v205 = vadd.f32 %v201, %v203
        %v206 = vld [vmem:[#allocation2 + $0x20] sm:$0xff]
        %v207 = vld [vmem:[#allocation2 + $0x28] sm:$0xff]
        %v208 = vld [vmem:[#allocation2 + $0x30] sm:$0xff]
        %v209 = vld [vmem:[#allocation2 + $0x38] sm:$0xff]
        %v210 = vld [vmem:[%s2] sm:$0x1]
        %v211 = vlaneseq
        %v212 = vshrl.u32 %v211, 7
        %v213 = vsub.s32 0, %v212
        %v214 = vrot.slane %v210, %v213
        %vm215 = vcmask 261120
        %v217 = vsel %vm215, %v204, 0
        %v220 = vsel %vm215, %v205, 0
        %222 = vmatprep.subr.mxu0 0.0
        %223 = vmatpush1.msra.mxu0 0.0
        %224 = vmatprep.subr.mxu0 0.0
        %225 = vmatpush1.msra.mxu0 0.0
        %226 = vmatprep.subr.mxu0 0.0
        %227 = vmatpush1.msra.mxu0 0.0
        %228 = vmatprep.subr.mxu0 0.0
        %229 = vmatpush1.msra.mxu0 0.0
        %230 = vmatprep.subr.mxu0 0.0
        %231 = vmatpush1.msra.mxu0 0.0
        %232 = vmatprep.subr.mxu0 0.0
        %233 = vmatpush1.msra.mxu0 0.0
        %234 = vmatprep.subr.mxu0 0.0
        %235 = vmatpush1.msra.mxu0 0.0
        %236 = vmatprep.subr.mxu0 0.0
        %237 = vmatpush1.msra.mxu0 0.0
        %238 = vmatprep.subr.mxu0 0.0
        %239 = vmatpush1.msra.mxu0 0.0
        %240 = vmatprep.subr.mxu0 0.0
        %241 = vmatpush1.msra.mxu0 0.0
        %242 = vmatprep.subr.mxu0 0.0
        %243 = vmatpush1.msra.mxu0 0.0
        %244 = vmatprep.subr.mxu0 0.0
        %245 = vmatpush1.msra.mxu0 0.0
        %246 = vmatprep.subr.mxu0 0.0
        %247 = vmatpush1.msra.mxu0 %v209
        %248 = vmatprep.subr.mxu0 0.0
        %249 = vmatpush1.msra.mxu0 %v208
        %250 = vmatprep.subr.mxu0 0.0
        %251 = vmatpush1.msra.mxu0 %v207
        %252 = vmatprep.subr.mxu0 0.0
        %253 = vmatpush1.msra.mxu0 %v206
        %254 = vmatprep.subr.mxu0 0.0
        %255 = vmatpush2.msra.mxu0 0.0
        %256 = vmatprep.subr.mxu0 0.0
        %257 = vmatpush2.msra.mxu0 0.0
        %258 = vmatprep.subr.mxu0 0.0
        %259 = vmatpush2.msra.mxu0 0.0
        %260 = vmatprep.subr.mxu0 0.0
        %261 = vmatpush2.msra.mxu0 0.0
        %262 = vmatprep.subr.mxu0 0.0
        %263 = vmatpush2.msra.mxu0 0.0
        %264 = vmatprep.subr.mxu0 0.0
        %265 = vmatpush2.msra.mxu0 0.0
        %266 = vmatprep.subr.mxu0 0.0
        %267 = vmatpush2.msra.mxu0 0.0
        %268 = vmatprep.subr.mxu0 0.0
        %269 = vmatpush2.msra.mxu0 0.0
        %270 = vmatprep.subr.mxu0 0.0
        %271 = vmatpush2.msra.mxu0 0.0
        %272 = vmatprep.subr.mxu0 0.0
        %273 = vmatpush2.msra.mxu0 0.0
        %274 = vmatprep.subr.mxu0 0.0
        %275 = vmatpush2.msra.mxu0 0.0
        %276 = vmatprep.subr.mxu0 0.0
        %277 = vmatpush2.msra.mxu0 0.0
        %278 = vmatprep.subr.mxu0 0.0
        %279 = vmatpush2.msra.mxu0 0.0
        %280 = vmatprep.subr.mxu0 0.0
        %281 = vmatpush2.msra.mxu0 0.0
        %282 = vmatprep.subr.mxu0 0.0
        %283 = vmatpush2.msra.mxu0 0.0
        %284 = vmatprep.subr.mxu0 0.0
        %285 = vmatpush2.msra.mxu0 0.0
        %286 = vmatprep.mubr.f32.mxu0 0.0
        %287 = vmatmul.mubr.f32.gmra.mxu0 %v217
        %v288 = vpop.f32.mrf.mxu0
        %v289 = vadd.f32 %v214, %v288
        %v290 = vpop.f32.mrf.mxu0
        %291 = vmatprep.mubr.f32.mxu0 0.0
        %292 = vmatmul.mubr.f32.gmra.mxu0 %v220
        %v293 = vpop.f32.mrf.mxu0
        %v294 = vadd.f32 %v214, %v293
        %v295 = vpop.f32.mrf.mxu0
        %296 = vdwg.mxu0
        %v297 = vld [vmem:[#allocation2 + $0x40] sm:$0xff]
        %v298 = vld [vmem:[#allocation2 + $0x48] sm:$0xff]
        %v299 = vld [vmem:[#allocation2 + $0x50] sm:$0xff]
        %v300 = vld [vmem:[#allocation2 + $0x58] sm:$0xff]
        %v301 = vld [vmem:[%s2 + $0x1] sm:$0x1]
        %v302 = vlaneseq
        %v303 = vshrl.u32 %v302, 7
        %v304 = vsub.s32 0, %v303
        %v305 = vrot.slane %v301, %v304
        %306 = vmatprep.subr.mxu0 0.0
        %307 = vmatpush1.msra.mxu0 0.0
        %308 = vmatprep.subr.mxu0 0.0
        %309 = vmatpush1.msra.mxu0 0.0
        %310 = vmatprep.subr.mxu0 0.0
        %311 = vmatpush1.msra.mxu0 0.0
        %312 = vmatprep.subr.mxu0 0.0
        %313 = vmatpush1.msra.mxu0 0.0
        %314 = vmatprep.subr.mxu0 0.0
        %315 = vmatpush1.msra.mxu0 0.0
        %316 = vmatprep.subr.mxu0 0.0
        %317 = vmatpush1.msra.mxu0 0.0
        %318 = vmatprep.subr.mxu0 0.0
        %319 = vmatpush1.msra.mxu0 0.0
        %320 = vmatprep.subr.mxu0 0.0
        %321 = vmatpush1.msra.mxu0 0.0
        %322 = vmatprep.subr.mxu0 0.0
        %323 = vmatpush1.msra.mxu0 0.0
        %324 = vmatprep.subr.mxu0 0.0
        %325 = vmatpush1.msra.mxu0 0.0
        %326 = vmatprep.subr.mxu0 0.0
        %327 = vmatpush1.msra.mxu0 0.0
        %328 = vmatprep.subr.mxu0 0.0
        %329 = vmatpush1.msra.mxu0 0.0
        %330 = vmatprep.subr.mxu0 0.0
        %331 = vmatpush1.msra.mxu0 %v300
        %332 = vmatprep.subr.mxu0 0.0
        %333 = vmatpush1.msra.mxu0 %v299
        %334 = vmatprep.subr.mxu0 0.0
        %335 = vmatpush1.msra.mxu0 %v298
        %336 = vmatprep.subr.mxu0 0.0
        %337 = vmatpush1.msra.mxu0 %v297
        %338 = vmatprep.subr.mxu0 0.0
        %339 = vmatpush2.msra.mxu0 0.0
        %340 = vmatprep.subr.mxu0 0.0
        %341 = vmatpush2.msra.mxu0 0.0
        %342 = vmatprep.subr.mxu0 0.0
        %343 = vmatpush2.msra.mxu0 0.0
        %344 = vmatprep.subr.mxu0 0.0
        %345 = vmatpush2.msra.mxu0 0.0
        %346 = vmatprep.subr.mxu0 0.0
        %347 = vmatpush2.msra.mxu0 0.0
        %348 = vmatprep.subr.mxu0 0.0
        %349 = vmatpush2.msra.mxu0 0.0
        %350 = vmatprep.subr.mxu0 0.0
        %351 = vmatpush2.msra.mxu0 0.0
        %352 = vmatprep.subr.mxu0 0.0
        %353 = vmatpush2.msra.mxu0 0.0
        %354 = vmatprep.subr.mxu0 0.0
        %355 = vmatpush2.msra.mxu0 0.0
        %356 = vmatprep.subr.mxu0 0.0
        %357 = vmatpush2.msra.mxu0 0.0
        %358 = vmatprep.subr.mxu0 0.0
        %359 = vmatpush2.msra.mxu0 0.0
        %360 = vmatprep.subr.mxu0 0.0
        %361 = vmatpush2.msra.mxu0 0.0
        %362 = vmatprep.subr.mxu0 0.0
        %363 = vmatpush2.msra.mxu0 0.0
        %364 = vmatprep.subr.mxu0 0.0
        %365 = vmatpush2.msra.mxu0 0.0
        %366 = vmatprep.subr.mxu0 0.0
        %367 = vmatpush2.msra.mxu0 0.0
        %368 = vmatprep.subr.mxu0 0.0
        %369 = vmatpush2.msra.mxu0 0.0
        %370 = vmatprep.mubr.f32.mxu0 0.0
        %371 = vmatmul.mubr.f32.gmra.mxu0 %v217
        %v372 = vpop.f32.mrf.mxu0
        %v373 = vadd.f32 %v305, %v372
        %v374 = vpop.f32.mrf.mxu0
        %375 = vmatprep.mubr.f32.mxu0 0.0
        %376 = vmatmul.mubr.f32.gmra.mxu0 %v220
        %v377 = vpop.f32.mrf.mxu0
        %v378 = vadd.f32 %v305, %v377
        %v379 = vpop.f32.mrf.mxu0
        %380 = vdwg.mxu0
        %v381 = vld [vmem:[#allocation2 + $0x60] sm:$0xff]
        %v382 = vld [vmem:[#allocation2 + $0x68] sm:$0xff]
        %v383 = vld [vmem:[#allocation2 + $0x70] sm:$0xff]
        %v384 = vld [vmem:[#allocation2 + $0x78] sm:$0xff]
        %v385 = vld [vmem:[%s2 + $0x2] sm:$0x1]
        %v386 = vlaneseq
        %v387 = vshrl.u32 %v386, 7
        %v388 = vsub.s32 0, %v387
        %v389 = vrot.slane %v385, %v388
        %390 = vmatprep.subr.mxu0 0.0
        %391 = vmatpush1.msra.mxu0 0.0
        %392 = vmatprep.subr.mxu0 0.0
        %393 = vmatpush1.msra.mxu0 0.0
        %394 = vmatprep.subr.mxu0 0.0
        %395 = vmatpush1.msra.mxu0 0.0
        %396 = vmatprep.subr.mxu0 0.0
        %397 = vmatpush1.msra.mxu0 0.0
        %398 = vmatprep.subr.mxu0 0.0
        %399 = vmatpush1.msra.mxu0 0.0
        %400 = vmatprep.subr.mxu0 0.0
        %401 = vmatpush1.msra.mxu0 0.0
        %402 = vmatprep.subr.mxu0 0.0
        %403 = vmatpush1.msra.mxu0 0.0
        %404 = vmatprep.subr.mxu0 0.0
        %405 = vmatpush1.msra.mxu0 0.0
        %406 = vmatprep.subr.mxu0 0.0
        %407 = vmatpush1.msra.mxu0 0.0
        %408 = vmatprep.subr.mxu0 0.0
        %409 = vmatpush1.msra.mxu0 0.0
        %410 = vmatprep.subr.mxu0 0.0
        %411 = vmatpush1.msra.mxu0 0.0
        %412 = vmatprep.subr.mxu0 0.0
        %413 = vmatpush1.msra.mxu0 0.0
        %414 = vmatprep.subr.mxu0 0.0
        %415 = vmatpush1.msra.mxu0 %v384
        %416 = vmatprep.subr.mxu0 0.0
        %417 = vmatpush1.msra.mxu0 %v383
        %418 = vmatprep.subr.mxu0 0.0
        %419 = vmatpush1.msra.mxu0 %v382
        %420 = vmatprep.subr.mxu0 0.0
        %421 = vmatpush1.msra.mxu0 %v381
        %422 = vmatprep.subr.mxu0 0.0
        %423 = vmatpush2.msra.mxu0 0.0
        %424 = vmatprep.subr.mxu0 0.0
        %425 = vmatpush2.msra.mxu0 0.0
        %426 = vmatprep.subr.mxu0 0.0
        %427 = vmatpush2.msra.mxu0 0.0
        %428 = vmatprep.subr.mxu0 0.0
        %429 = vmatpush2.msra.mxu0 0.0
        %430 = vmatprep.subr.mxu0 0.0
        %431 = vmatpush2.msra.mxu0 0.0
        %432 = vmatprep.subr.mxu0 0.0
        %433 = vmatpush2.msra.mxu0 0.0
        %434 = vmatprep.subr.mxu0 0.0
        %435 = vmatpush2.msra.mxu0 0.0
        %436 = vmatprep.subr.mxu0 0.0
        %437 = vmatpush2.msra.mxu0 0.0
        %438 = vmatprep.subr.mxu0 0.0
        %439 = vmatpush2.msra.mxu0 0.0
        %440 = vmatprep.subr.mxu0 0.0
        %441 = vmatpush2.msra.mxu0 0.0
        %442 = vmatprep.subr.mxu0 0.0
        %443 = vmatpush2.msra.mxu0 0.0
        %444 = vmatprep.subr.mxu0 0.0
        %445 = vmatpush2.msra.mxu0 0.0
        %446 = vmatprep.subr.mxu0 0.0
        %447 = vmatpush2.msra.mxu0 0.0
        %448 = vmatprep.subr.mxu0 0.0
        %449 = vmatpush2.msra.mxu0 0.0
        %450 = vmatprep.subr.mxu0 0.0
        %451 = vmatpush2.msra.mxu0 0.0
        %452 = vmatprep.subr.mxu0 0.0
        %453 = vmatpush2.msra.mxu0 0.0
        %454 = vmatprep.mubr.f32.mxu0 0.0
        %455 = vmatmul.mubr.f32.gmra.mxu0 %v217
        %v456 = vpop.f32.mrf.mxu0
        %v457 = vadd.f32 %v389, %v456
        %v458 = vpop.f32.mrf.mxu0
        %459 = vmatprep.mubr.f32.mxu0 0.0
        %460 = vmatmul.mubr.f32.gmra.mxu0 %v220
        %v461 = vpop.f32.mrf.mxu0
        %v462 = vadd.f32 %v389, %v461
        %v463 = vpop.f32.mrf.mxu0
        %464 = vdwg.mxu0
        %vm465 = vcmask 130048
        %v467 = vsel %vm465, %v289, 0
        %v470 = vsel %vm465, %v294, 0
        %v473 = vsel %vm465, %v373, 0
        %v476 = vsel %vm465, %v378, 0
        %478 = vmatprep.subr.mxu0 0.0
        %479 = vmatpush1.xpose.msra.mxu0 0.0
        %480 = vmatprep.subr.mxu0 0.0
        %481 = vmatpush1.xpose.msra.mxu0 0.0
        %482 = vmatprep.subr.mxu0 0.0
        %483 = vmatpush1.xpose.msra.mxu0 0.0
        %484 = vmatprep.subr.mxu0 0.0
        %485 = vmatpush1.xpose.msra.mxu0 0.0
        %486 = vmatprep.subr.mxu0 0.0
        %487 = vmatpush1.xpose.msra.mxu0 0.0
        %488 = vmatprep.subr.mxu0 0.0
        %489 = vmatpush1.xpose.msra.mxu0 0.0
        %490 = vmatprep.subr.mxu0 0.0
        %491 = vmatpush1.xpose.msra.mxu0 0.0
        %492 = vmatprep.subr.mxu0 0.0
        %493 = vmatpush1.xpose.msra.mxu0 0.0
        %494 = vmatprep.subr.mxu0 0.0
        %495 = vmatpush1.xpose.msra.mxu0 0.0
        %496 = vmatprep.subr.mxu0 0.0
        %497 = vmatpush1.xpose.msra.mxu0 0.0
        %498 = vmatprep.subr.mxu0 0.0
        %499 = vmatpush1.xpose.msra.mxu0 0.0
        %500 = vmatprep.subr.mxu0 0.0
        %501 = vmatpush1.xpose.msra.mxu0 0.0
        %502 = vmatprep.subr.mxu0 0.0
        %503 = vmatpush1.xpose.msra.mxu0 0.0
        %504 = vmatprep.subr.mxu0 0.0
        %505 = vmatpush1.xpose.msra.mxu0 0.0
        %506 = vmatprep.subr.mxu0 0.0
        %507 = vmatpush1.xpose.msra.mxu0 %v476
        %508 = vmatprep.subr.mxu0 0.0
        %509 = vmatpush1.xpose.msra.mxu0 %v473
        %510 = vmatprep.subr.mxu0 0.0
        %511 = vmatpush2.xpose.msra.mxu0 0.0
        %512 = vmatprep.subr.mxu0 0.0
        %513 = vmatpush2.xpose.msra.mxu0 0.0
        %514 = vmatprep.subr.mxu0 0.0
        %515 = vmatpush2.xpose.msra.mxu0 0.0
        %516 = vmatprep.subr.mxu0 0.0
        %517 = vmatpush2.xpose.msra.mxu0 0.0
        %518 = vmatprep.subr.mxu0 0.0
        %519 = vmatpush2.xpose.msra.mxu0 0.0
        %520 = vmatprep.subr.mxu0 0.0
        %521 = vmatpush2.xpose.msra.mxu0 0.0
        %522 = vmatprep.subr.mxu0 0.0
        %523 = vmatpush2.xpose.msra.mxu0 0.0
        %524 = vmatprep.subr.mxu0 0.0
        %525 = vmatpush2.xpose.msra.mxu0 0.0
        %526 = vmatprep.subr.mxu0 0.0
        %527 = vmatpush2.xpose.msra.mxu0 0.0
        %528 = vmatprep.subr.mxu0 0.0
        %529 = vmatpush2.xpose.msra.mxu0 0.0
        %530 = vmatprep.subr.mxu0 0.0
        %531 = vmatpush2.xpose.msra.mxu0 0.0
        %532 = vmatprep.subr.mxu0 0.0
        %533 = vmatpush2.xpose.msra.mxu0 0.0
        %534 = vmatprep.subr.mxu0 0.0
        %535 = vmatpush2.xpose.msra.mxu0 0.0
        %536 = vmatprep.subr.mxu0 0.0
        %537 = vmatpush2.xpose.msra.mxu0 0.0
        %538 = vmatprep.subr.mxu0 0.0
        %539 = vmatpush2.xpose.msra.mxu0 0.0
        %540 = vmatprep.subr.mxu0 0.0
        %541 = vmatpush2.xpose.msra.mxu0 0.0
        %542 = vmatprep.mubr.f32.mxu0 0.0
        %543 = vmatmul.mubr.f32.gmra.mxu0 %v467
        %v544 = vpop.f32.mrf.mxu0
        %v545 = vadd.f32 0.0, %v544
        %v546 = vpop.f32.mrf.mxu0
        %547 = vmatprep.mubr.f32.mxu0 0.0
        %548 = vmatmul.mubr.f32.gmra.mxu0 %v470
        %v549 = vpop.f32.mrf.mxu0
        %v550 = vadd.f32 0.0, %v549
        %v551 = vpop.f32.mrf.mxu0
        %552 = vdwg.mxu0
        %v553 = vmul.f32 %v545, 0.25
        %v554 = vmul.f32 %v550, 0.25
        %v555 = vsel %vm465, %v553, -inf
        %556 = vmax.xlane.f32.xlu0 %v555
        %v557 = vpop.xlane.xlu0 %556
        %v558 = vsel %vm465, %v554, -inf
        %559 = vmax.xlane.f32.xlu0 %v558
        %v560 = vpop.xlane.xlu0 %559
        %v561 = vsub.f32 %v553, %v557
        %v562 = vsub.f32 %v554, %v560
        %v563 = vmul.f32 %v561, 1.442695
        %v564 = vpow.pop %v563
        %v565 = vmul.f32 %v562, 1.442695
        %v566 = vpow.pop %v565
        %v567 = vsel %vm465, %v564, 0.0
        %568 = vadd.xlane.f32.xlu0 %v567
        %v569 = vpop.xlane.xlu0 %568
        %v570 = vsel %vm465, %v566, 0.0
        %571 = vadd.xlane.f32.xlu0 %v570
        %v572 = vpop.xlane.xlu0 %571
        %v573 = vrcp.pop %v569
        %v574 = vmul.f32 %v564, %v573
        %v575 = vrcp.pop %v572
        %v576 = vmul.f32 %v566, %v575
        %v578 = vsel %vm465, %v574, 0
        %v581 = vsel %vm465, %v576, 0
        %583 = vmatprep.subr.mxu0 0.0
        %584 = vmatpush1.msra.mxu0 0.0
        %585 = vmatprep.subr.mxu0 0.0
        %586 = vmatpush1.msra.mxu0 0.0
        %587 = vmatprep.subr.mxu0 0.0
        %588 = vmatpush1.msra.mxu0 0.0
        %589 = vmatprep.subr.mxu0 0.0
        %590 = vmatpush1.msra.mxu0 0.0
        %591 = vmatprep.subr.mxu0 0.0
        %592 = vmatpush1.msra.mxu0 0.0
        %593 = vmatprep.subr.mxu0 0.0
        %594 = vmatpush1.msra.mxu0 0.0
        %595 = vmatprep.subr.mxu0 0.0
        %596 = vmatpush1.msra.mxu0 0.0
        %597 = vmatprep.subr.mxu0 0.0
        %598 = vmatpush1.msra.mxu0 0.0
        %599 = vmatprep.subr.mxu0 0.0
        %600 = vmatpush1.msra.mxu0 0.0
        %601 = vmatprep.subr.mxu0 0.0
        %602 = vmatpush1.msra.mxu0 0.0
        %603 = vmatprep.subr.mxu0 0.0
        %604 = vmatpush1.msra.mxu0 0.0
        %605 = vmatprep.subr.mxu0 0.0
        %606 = vmatpush1.msra.mxu0 0.0
        %607 = vmatprep.subr.mxu0 0.0
        %608 = vmatpush1.msra.mxu0 0.0
        %609 = vmatprep.subr.mxu0 0.0
        %610 = vmatpush1.msra.mxu0 0.0
        %611 = vmatprep.subr.mxu0 0.0
        %612 = vmatpush1.msra.mxu0 %v462
        %613 = vmatprep.subr.mxu0 0.0
        %614 = vmatpush1.msra.mxu0 %v457
        %615 = vmatprep.subr.mxu0 0.0
        %616 = vmatpush2.msra.mxu0 0.0
        %617 = vmatprep.subr.mxu0 0.0
        %618 = vmatpush2.msra.mxu0 0.0
        %619 = vmatprep.subr.mxu0 0.0
        %620 = vmatpush2.msra.mxu0 0.0
        %621 = vmatprep.subr.mxu0 0.0
        %622 = vmatpush2.msra.mxu0 0.0
        %623 = vmatprep.subr.mxu0 0.0
        %624 = vmatpush2.msra.mxu0 0.0
        %625 = vmatprep.subr.mxu0 0.0
        %626 = vmatpush2.msra.mxu0 0.0
        %627 = vmatprep.subr.mxu0 0.0
        %628 = vmatpush2.msra.mxu0 0.0
        %629 = vmatprep.subr.mxu0 0.0
        %630 = vmatpush2.msra.mxu0 0.0
        %631 = vmatprep.subr.mxu0 0.0
        %632 = vmatpush2.msra.mxu0 0.0
        %633 = vmatprep.subr.mxu0 0.0
        %634 = vmatpush2.msra.mxu0 0.0
        %635 = vmatprep.subr.mxu0 0.0
        %636 = vmatpush2.msra.mxu0 0.0
        %637 = vmatprep.subr.mxu0 0.0
        %638 = vmatpush2.msra.mxu0 0.0
        %639 = vmatprep.subr.mxu0 0.0
        %640 = vmatpush2.msra.mxu0 0.0
        %641 = vmatprep.subr.mxu0 0.0
        %642 = vmatpush2.msra.mxu0 0.0
        %643 = vmatprep.subr.mxu0 0.0
        %644 = vmatpush2.msra.mxu0 0.0
        %645 = vmatprep.subr.mxu0 0.0
        %646 = vmatpush2.msra.mxu0 0.0
        %647 = vmatprep.mubr.f32.mxu0 0.0
        %648 = vmatmul.mubr.f32.gmra.mxu0 %v578
        %v649 = vpop.f32.mrf.mxu0
        %v650 = vadd.f32 0.0, %v649
        %v651 = vpop.f32.mrf.mxu0
        %652 = vmatprep.mubr.f32.mxu0 0.0
        %653 = vmatmul.mubr.f32.gmra.mxu0 %v581
        %v654 = vpop.f32.mrf.mxu0
        %v655 = vadd.f32 0.0, %v654
        %v656 = vpop.f32.mrf.mxu0
        %657 = vdwg.mxu0
        %v658 = vld [vmem:[#allocation2 + $0xe0] sm:$0xff]
        %v659 = vld [vmem:[#allocation2 + $0xe8] sm:$0xff]
        %v660 = vld [vmem:[#allocation2 + $0x80] sm:$0xff]
        %v661 = vld [vmem:[#allocation2 + $0x88] sm:$0xff]
        %v662 = vld [vmem:[#allocation2 + $0x90] sm:$0xff]
        %v663 = vld [vmem:[#allocation2 + $0x98] sm:$0xff]
        %v664 = vld [vmem:[%s2 + $0x3] sm:$0x1]
        %v665 = vlaneseq
        %v666 = vshrl.u32 %v665, 7
        %v667 = vsub.s32 0, %v666
        %v668 = vrot.slane %v664, %v667
        %669 = vmatprep.subr.mxu0 0.0
        %670 = vmatpush1.msra.mxu0 0.0
        %671 = vmatprep.subr.mxu0 0.0
        %672 = vmatpush1.msra.mxu0 0.0
        %673 = vmatprep.subr.mxu0 0.0
        %674 = vmatpush1.msra.mxu0 0.0
        %675 = vmatprep.subr.mxu0 0.0
        %676 = vmatpush1.msra.mxu0 0.0
        %677 = vmatprep.subr.mxu0 0.0
        %678 = vmatpush1.msra.mxu0 0.0
        %679 = vmatprep.subr.mxu0 0.0
        %680 = vmatpush1.msra.mxu0 0.0
        %681 = vmatprep.subr.mxu0 0.0
        %682 = vmatpush1.msra.mxu0 0.0
        %683 = vmatprep.subr.mxu0 0.0
        %684 = vmatpush1.msra.mxu0 0.0
        %685 = vmatprep.subr.mxu0 0.0
        %686 = vmatpush1.msra.mxu0 0.0
        %687 = vmatprep.subr.mxu0 0.0
        %688 = vmatpush1.msra.mxu0 0.0
        %689 = vmatprep.subr.mxu0 0.0
        %690 = vmatpush1.msra.mxu0 0.0
        %691 = vmatprep.subr.mxu0 0.0
        %692 = vmatpush1.msra.mxu0 0.0
        %693 = vmatprep.subr.mxu0 0.0
        %694 = vmatpush1.msra.mxu0 %v663
        %695 = vmatprep.subr.mxu0 0.0
        %696 = vmatpush1.msra.mxu0 %v662
        %697 = vmatprep.subr.mxu0 0.0
        %698 = vmatpush1.msra.mxu0 %v661
        %699 = vmatprep.subr.mxu0 0.0
        %700 = vmatpush1.msra.mxu0 %v660
        %701 = vmatprep.subr.mxu0 0.0
        %702 = vmatpush2.msra.mxu0 0.0
        %703 = vmatprep.subr.mxu0 0.0
        %704 = vmatpush2.msra.mxu0 0.0
        %705 = vmatprep.subr.mxu0 0.0
        %706 = vmatpush2.msra.mxu0 0.0
        %707 = vmatprep.subr.mxu0 0.0
        %708 = vmatpush2.msra.mxu0 0.0
        %709 = vmatprep.subr.mxu0 0.0
        %710 = vmatpush2.msra.mxu0 0.0
        %711 = vmatprep.subr.mxu0 0.0
        %712 = vmatpush2.msra.mxu0 0.0
        %713 = vmatprep.subr.mxu0 0.0
        %714 = vmatpush2.msra.mxu0 0.0
        %715 = vmatprep.subr.mxu0 0.0
        %716 = vmatpush2.msra.mxu0 0.0
        %717 = vmatprep.subr.mxu0 0.0
        %718 = vmatpush2.msra.mxu0 0.0
        %719 = vmatprep.subr.mxu0 0.0
        %720 = vmatpush2.msra.mxu0 0.0
        %721 = vmatprep.subr.mxu0 0.0
        %722 = vmatpush2.msra.mxu0 0.0
        %723 = vmatprep.subr.mxu0 0.0
        %724 = vmatpush2.msra.mxu0 0.0
        %725 = vmatprep.subr.mxu0 0.0
        %726 = vmatpush2.msra.mxu0 0.0
        %727 = vmatprep.subr.mxu0 0.0
        %728 = vmatpush2.msra.mxu0 0.0
        %729 = vmatprep.subr.mxu0 0.0
        %730 = vmatpush2.msra.mxu0 0.0
        %731 = vmatprep.subr.mxu0 0.0
        %732 = vmatpush2.msra.mxu0 0.0
        %733 = vmatprep.mubr.f32.mxu0 0.0
        %734 = vmatmul.mubr.f32.gmra.mxu0 %v217
        %v735 = vpop.f32.mrf.mxu0
        %v736 = vadd.f32 %v668, %v735
        %v737 = vpop.f32.mrf.mxu0
        %738 = vmatprep.mubr.f32.mxu0 0.0
        %739 = vmatmul.mubr.f32.gmra.mxu0 %v220
        %v740 = vpop.f32.mrf.mxu0
        %v741 = vadd.f32 %v668, %v740
        %v742 = vpop.f32.mrf.mxu0
        %743 = vdwg.mxu0
        %v744 = vld [vmem:[#allocation2 + $0xa0] sm:$0xff]
        %v745 = vld [vmem:[#allocation2 + $0xa8] sm:$0xff]
        %v746 = vld [vmem:[#allocation2 + $0xb0] sm:$0xff]
        %v747 = vld [vmem:[#allocation2 + $0xb8] sm:$0xff]
        %v748 = vld [vmem:[%s2 + $0x4] sm:$0x1]
        %v749 = vlaneseq
        %v750 = vshrl.u32 %v749, 7
        %v751 = vsub.s32 0, %v750
        %v752 = vrot.slane %v748, %v751
        %753 = vmatprep.subr.mxu0 0.0
        %754 = vmatpush1.msra.mxu0 0.0
        %755 = vmatprep.subr.mxu0 0.0
        %756 = vmatpush1.msra.mxu0 0.0
        %757 = vmatprep.subr.mxu0 0.0
        %758 = vmatpush1.msra.mxu0 0.0
        %759 = vmatprep.subr.mxu0 0.0
        %760 = vmatpush1.msra.mxu0 0.0
        %761 = vmatprep.subr.mxu0 0.0
        %762 = vmatpush1.msra.mxu0 0.0
        %763 = vmatprep.subr.mxu0 0.0
        %764 = vmatpush1.msra.mxu0 0.0
        %765 = vmatprep.subr.mxu0 0.0
        %766 = vmatpush1.msra.mxu0 0.0
        %767 = vmatprep.subr.mxu0 0.0
        %768 = vmatpush1.msra.mxu0 0.0
        %769 = vmatprep.subr.mxu0 0.0
        %770 = vmatpush1.msra.mxu0 0.0
        %771 = vmatprep.subr.mxu0 0.0
        %772 = vmatpush1.msra.mxu0 0.0
        %773 = vmatprep.subr.mxu0 0.0
        %774 = vmatpush1.msra.mxu0 0.0
        %775 = vmatprep.subr.mxu0 0.0
        %776 = vmatpush1.msra.mxu0 0.0
        %777 = vmatprep.subr.mxu0 0.0
        %778 = vmatpush1.msra.mxu0 %v747
        %779 = vmatprep.subr.mxu0 0.0
        %780 = vmatpush1.msra.mxu0 %v746
        %781 = vmatprep.subr.mxu0 0.0
        %782 = vmatpush1.msra.mxu0 %v745
        %783 = vmatprep.subr.mxu0 0.0
        %784 = vmatpush1.msra.mxu0 %v744
        %785 = vmatprep.subr.mxu0 0.0
        %786 = vmatpush2.msra.mxu0 0.0
        %787 = vmatprep.subr.mxu0 0.0
        %788 = vmatpush2.msra.mxu0 0.0
        %789 = vmatprep.subr.mxu0 0.0
        %790 = vmatpush2.msra.mxu0 0.0
        %791 = vmatprep.subr.mxu0 0.0
        %792 = vmatpush2.msra.mxu0 0.0
        %793 = vmatprep.subr.mxu0 0.0
        %794 = vmatpush2.msra.mxu0 0.0
        %795 = vmatprep.subr.mxu0 0.0
        %796 = vmatpush2.msra.mxu0 0.0
        %797 = vmatprep.subr.mxu0 0.0
        %798 = vmatpush2.msra.mxu0 0.0
        %799 = vmatprep.subr.mxu0 0.0
        %800 = vmatpush2.msra.mxu0 0.0
        %801 = vmatprep.subr.mxu0 0.0
        %802 = vmatpush2.msra.mxu0 0.0
        %803 = vmatprep.subr.mxu0 0.0
        %804 = vmatpush2.msra.mxu0 0.0
        %805 = vmatprep.subr.mxu0 0.0
        %806 = vmatpush2.msra.mxu0 0.0
        %807 = vmatprep.subr.mxu0 0.0
        %808 = vmatpush2.msra.mxu0 0.0
        %809 = vmatprep.subr.mxu0 0.0
        %810 = vmatpush2.msra.mxu0 0.0
        %811 = vmatprep.subr.mxu0 0.0
        %812 = vmatpush2.msra.mxu0 0.0
        %813 = vmatprep.subr.mxu0 0.0
        %814 = vmatpush2.msra.mxu0 0.0
        %815 = vmatprep.subr.mxu0 0.0
        %816 = vmatpush2.msra.mxu0 0.0
        %817 = vmatprep.mubr.f32.mxu0 0.0
        %818 = vmatmul.mubr.f32.gmra.mxu0 %v217
        %v819 = vpop.f32.mrf.mxu0
        %v820 = vadd.f32 %v752, %v819
        %v821 = vpop.f32.mrf.mxu0
        %822 = vmatprep.mubr.f32.mxu0 0.0
        %823 = vmatmul.mubr.f32.gmra.mxu0 %v220
        %v824 = vpop.f32.mrf.mxu0
        %v825 = vadd.f32 %v752, %v824
        %v826 = vpop.f32.mrf.mxu0
        %827 = vdwg.mxu0
        %v828 = vld [vmem:[#allocation2 + $0xc0] sm:$0xff]
        %v829 = vld [vmem:[#allocation2 + $0xc8] sm:$0xff]
        %v830 = vld [vmem:[#allocation2 + $0xd0] sm:$0xff]
        %v831 = vld [vmem:[#allocation2 + $0xd8] sm:$0xff]
        %v832 = vld [vmem:[%s2 + $0x5] sm:$0x1]
        %v833 = vlaneseq
        %v834 = vshrl.u32 %v833, 7
        %v835 = vsub.s32 0, %v834
        %v836 = vrot.slane %v832, %v835
        %837 = vmatprep.subr.mxu0 0.0
        %838 = vmatpush1.msra.mxu0 0.0
        %839 = vmatprep.subr.mxu0 0.0
        %840 = vmatpush1.msra.mxu0 0.0
        %841 = vmatprep.subr.mxu0 0.0
        %842 = vmatpush1.msra.mxu0 0.0
        %843 = vmatprep.subr.mxu0 0.0
        %844 = vmatpush1.msra.mxu0 0.0
        %845 = vmatprep.subr.mxu0 0.0
        %846 = vmatpush1.msra.mxu0 0.0
        %847 = vmatprep.subr.mxu0 0.0
        %848 = vmatpush1.msra.mxu0 0.0
        %849 = vmatprep.subr.mxu0 0.0
        %850 = vmatpush1.msra.mxu0 0.0
        %851 = vmatprep.subr.mxu0 0.0
        %852 = vmatpush1.msra.mxu0 0.0
        %853 = vmatprep.subr.mxu0 0.0
        %854 = vmatpush1.msra.mxu0 0.0
        %855 = vmatprep.subr.mxu0 0.0
        %856 = vmatpush1.msra.mxu0 0.0
        %857 = vmatprep.subr.mxu0 0.0
        %858 = vmatpush1.msra.mxu0 0.0
        %859 = vmatprep.subr.mxu0 0.0
        %860 = vmatpush1.msra.mxu0 0.0
        %861 = vmatprep.subr.mxu0 0.0
        %862 = vmatpush1.msra.mxu0 %v831
        %863 = vmatprep.subr.mxu0 0.0
        %864 = vmatpush1.msra.mxu0 %v830
        %865 = vmatprep.subr.mxu0 0.0
        %866 = vmatpush1.msra.mxu0 %v829
        %867 = vmatprep.subr.mxu0 0.0
        %868 = vmatpush1.msra.mxu0 %v828
        %869 = vmatprep.subr.mxu0 0.0
        %870 = vmatpush2.msra.mxu0 0.0
        %871 = vmatprep.subr.mxu0 0.0
        %872 = vmatpush2.msra.mxu0 0.0
        %873 = vmatprep.subr.mxu0 0.0
        %874 = vmatpush2.msra.mxu0 0.0
        %875 = vmatprep.subr.mxu0 0.0
        %876 = vmatpush2.msra.mxu0 0.0
        %877 = vmatprep.subr.mxu0 0.0
        %878 = vmatpush2.msra.mxu0 0.0
        %879 = vmatprep.subr.mxu0 0.0
        %880 = vmatpush2.msra.mxu0 0.0
        %881 = vmatprep.subr.mxu0 0.0
        %882 = vmatpush2.msra.mxu0 0.0
        %883 = vmatprep.subr.mxu0 0.0
        %884 = vmatpush2.msra.mxu0 0.0
        %885 = vmatprep.subr.mxu0 0.0
        %886 = vmatpush2.msra.mxu0 0.0
        %887 = vmatprep.subr.mxu0 0.0
        %888 = vmatpush2.msra.mxu0 0.0
        %889 = vmatprep.subr.mxu0 0.0
        %890 = vmatpush2.msra.mxu0 0.0
        %891 = vmatprep.subr.mxu0 0.0
        %892 = vmatpush2.msra.mxu0 0.0
        %893 = vmatprep.subr.mxu0 0.0
        %894 = vmatpush2.msra.mxu0 0.0
        %895 = vmatprep.subr.mxu0 0.0
        %896 = vmatpush2.msra.mxu0 0.0
        %897 = vmatprep.subr.mxu0 0.0
        %898 = vmatpush2.msra.mxu0 0.0
        %899 = vmatprep.subr.mxu0 0.0
        %900 = vmatpush2.msra.mxu0 0.0
        %901 = vmatprep.mubr.f32.mxu0 0.0
        %902 = vmatmul.mubr.f32.gmra.mxu0 %v217
        %v903 = vpop.f32.mrf.mxu0
        %v904 = vadd.f32 %v836, %v903
        %v905 = vpop.f32.mrf.mxu0
        %906 = vmatprep.mubr.f32.mxu0 0.0
        %907 = vmatmul.mubr.f32.gmra.mxu0 %v220
        %v908 = vpop.f32.mrf.mxu0
        %v909 = vadd.f32 %v836, %v908
        %v910 = vpop.f32.mrf.mxu0
        %911 = vdwg.mxu0
        %v913 = vsel %vm465, %v736, 0
        %v916 = vsel %vm465, %v741, 0
        %v919 = vsel %vm465, %v820, 0
        %v922 = vsel %vm465, %v825, 0
        %924 = vmatprep.subr.mxu0 0.0
        %925 = vmatpush1.xpose.msra.mxu0 0.0
        %926 = vmatprep.subr.mxu0 0.0
        %927 = vmatpush1.xpose.msra.mxu0 0.0
        %928 = vmatprep.subr.mxu0 0.0
        %929 = vmatpush1.xpose.msra.mxu0 0.0
        %930 = vmatprep.subr.mxu0 0.0
        %931 = vmatpush1.xpose.msra.mxu0 0.0
        %932 = vmatprep.subr.mxu0 0.0
        %933 = vmatpush1.xpose.msra.mxu0 0.0
        %934 = vmatprep.subr.mxu0 0.0
        %935 = vmatpush1.xpose.msra.mxu0 0.0
        %936 = vmatprep.subr.mxu0 0.0
        %937 = vmatpush1.xpose.msra.mxu0 0.0
        %938 = vmatprep.subr.mxu0 0.0
        %939 = vmatpush1.xpose.msra.mxu0 0.0
        %940 = vmatprep.subr.mxu0 0.0
        %941 = vmatpush1.xpose.msra.mxu0 0.0
        %942 = vmatprep.subr.mxu0 0.0
        %943 = vmatpush1.xpose.msra.mxu0 0.0
        %944 = vmatprep.subr.mxu0 0.0
        %945 = vmatpush1.xpose.msra.mxu0 0.0
        %946 = vmatprep.subr.mxu0 0.0
        %947 = vmatpush1.xpose.msra.mxu0 0.0
        %948 = vmatprep.subr.mxu0 0.0
        %949 = vmatpush1.xpose.msra.mxu0 0.0
        %950 = vmatprep.subr.mxu0 0.0
        %951 = vmatpush1.xpose.msra.mxu0 0.0
        %952 = vmatprep.subr.mxu0 0.0
        %953 = vmatpush1.xpose.msra.mxu0 %v922
        %954 = vmatprep.subr.mxu0 0.0
        %955 = vmatpush1.xpose.msra.mxu0 %v919
        %956 = vmatprep.subr.mxu0 0.0
        %957 = vmatpush2.xpose.msra.mxu0 0.0
        %958 = vmatprep.subr.mxu0 0.0
        %959 = vmatpush2.xpose.msra.mxu0 0.0
        %960 = vmatprep.subr.mxu0 0.0
        %961 = vmatpush2.xpose.msra.mxu0 0.0
        %962 = vmatprep.subr.mxu0 0.0
        %963 = vmatpush2.xpose.msra.mxu0 0.0
        %964 = vmatprep.subr.mxu0 0.0
        %965 = vmatpush2.xpose.msra.mxu0 0.0
        %966 = vmatprep.subr.mxu0 0.0
        %967 = vmatpush2.xpose.msra.mxu0 0.0
        %968 = vmatprep.subr.mxu0 0.0
        %969 = vmatpush2.xpose.msra.mxu0 0.0
        %970 = vmatprep.subr.mxu0 0.0
        %971 = vmatpush2.xpose.msra.mxu0 0.0
        %972 = vmatprep.subr.mxu0 0.0
        %973 = vmatpush2.xpose.msra.mxu0 0.0
        %974 = vmatprep.subr.mxu0 0.0
        %975 = vmatpush2.xpose.msra.mxu0 0.0
        %976 = vmatprep.subr.mxu0 0.0
        %977 = vmatpush2.xpose.msra.mxu0 0.0
        %978 = vmatprep.subr.mxu0 0.0
        %979 = vmatpush2.xpose.msra.mxu0 0.0
        %980 = vmatprep.subr.mxu0 0.0
        %981 = vmatpush2.xpose.msra.mxu0 0.0
        %982 = vmatprep.subr.mxu0 0.0
        %983 = vmatpush2.xpose.msra.mxu0 0.0
        %984 = vmatprep.subr.mxu0 0.0
        %985 = vmatpush2.xpose.msra.mxu0 0.0
        %986 = vmatprep.subr.mxu0 0.0
        %987 = vmatpush2.xpose.msra.mxu0 0.0
        %988 = vmatprep.mubr.f32.mxu0 0.0
        %989 = vmatmul.mubr.f32.gmra.mxu0 %v913
        %v990 = vpop.f32.mrf.mxu0
        %v991 = vadd.f32 0.0, %v990
        %v992 = vpop.f32.mrf.mxu0
        %993 = vmatprep.mubr.f32.mxu0 0.0
        %994 = vmatmul.mubr.f32.gmra.mxu0 %v916
        %v995 = vpop.f32.mrf.mxu0
        %v996 = vadd.f32 0.0, %v995
        %v997 = vpop.f32.mrf.mxu0
        %998 = vdwg.mxu0
        %v999 = vmul.f32 %v991, 0.25
        %v1000 = vmul.f32 %v996, 0.25
        %v1001 = vsel %vm465, %v999, -inf
        %1002 = vmax.xlane.f32.xlu0 %v1001
        %v1003 = vpop.xlane.xlu0 %1002
        %v1004 = vsel %vm465, %v1000, -inf
        %1005 = vmax.xlane.f32.xlu0 %v1004
        %v1006 = vpop.xlane.xlu0 %1005
        %v1007 = vsub.f32 %v999, %v1003
        %v1008 = vsub.f32 %v1000, %v1006
        %v1009 = vmul.f32 %v1007, 1.442695
        %v1010 = vpow.pop %v1009
        %v1011 = vmul.f32 %v1008, 1.442695
        %v1012 = vpow.pop %v1011
        %v1013 = vsel %vm465, %v1010, 0.0
        %1014 = vadd.xlane.f32.xlu0 %v1013
        %v1015 = vpop.xlane.xlu0 %1014
        %v1016 = vsel %vm465, %v1012, 0.0
        %1017 = vadd.xlane.f32.xlu0 %v1016
        %v1018 = vpop.xlane.xlu0 %1017
        %v1019 = vrcp.pop %v1015
        %v1020 = vmul.f32 %v1010, %v1019
        %v1021 = vrcp.pop %v1018
        %v1022 = vmul.f32 %v1012, %v1021
        %v1024 = vsel %vm465, %v1020, 0
        %v1027 = vsel %vm465, %v1022, 0
        %1029 = vmatprep.subr.mxu0 0.0
        %1030 = vmatpush1.msra.mxu0 0.0
        %1031 = vmatprep.subr.mxu0 0.0
        %1032 = vmatpush1.msra.mxu0 0.0
        %1033 = vmatprep.subr.mxu0 0.0
        %1034 = vmatpush1.msra.mxu0 0.0
        %1035 = vmatprep.subr.mxu0 0.0
        %1036 = vmatpush1.msra.mxu0 0.0
        %1037 = vmatprep.subr.mxu0 0.0
        %1038 = vmatpush1.msra.mxu0 0.0
        %1039 = vmatprep.subr.mxu0 0.0
        %1040 = vmatpush1.msra.mxu0 0.0
        %1041 = vmatprep.subr.mxu0 0.0
        %1042 = vmatpush1.msra.mxu0 0.0
        %1043 = vmatprep.subr.mxu0 0.0
        %1044 = vmatpush1.msra.mxu0 0.0
        %1045 = vmatprep.subr.mxu0 0.0
        %1046 = vmatpush1.msra.mxu0 0.0
        %1047 = vmatprep.subr.mxu0 0.0
        %1048 = vmatpush1.msra.mxu0 0.0
        %1049 = vmatprep.subr.mxu0 0.0
        %1050 = vmatpush1.msra.mxu0 0.0
        %1051 = vmatprep.subr.mxu0 0.0
        %1052 = vmatpush1.msra.mxu0 0.0
        %1053 = vmatprep.subr.mxu0 0.0
        %1054 = vmatpush1.msra.mxu0 0.0
        %1055 = vmatprep.subr.mxu0 0.0
        %1056 = vmatpush1.msra.mxu0 0.0
        %1057 = vmatprep.subr.mxu0 0.0
        %1058 = vmatpush1.msra.mxu0 %v909
        %1059 = vmatprep.subr.mxu0 0.0
        %1060 = vmatpush1.msra.mxu0 %v904
        %1061 = vmatprep.subr.mxu0 0.0
        %1062 = vmatpush2.msra.mxu0 0.0
        %1063 = vmatprep.subr.mxu0 0.0
        %1064 = vmatpush2.msra.mxu0 0.0
        %1065 = vmatprep.subr.mxu0 0.0
        %1066 = vmatpush2.msra.mxu0 0.0
        %1067 = vmatprep.subr.mxu0 0.0
        %1068 = vmatpush2.msra.mxu0 0.0
        %1069 = vmatprep.subr.mxu0 0.0
        %1070 = vmatpush2.msra.mxu0 0.0
        %1071 = vmatprep.subr.mxu0 0.0
        %1072 = vmatpush2.msra.mxu0 0.0
        %1073 = vmatprep.subr.mxu0 0.0
        %1074 = vmatpush2.msra.mxu0 0.0
        %1075 = vmatprep.subr.mxu0 0.0
        %1076 = vmatpush2.msra.mxu0 0.0
        %1077 = vmatprep.subr.mxu0 0.0
        %1078 = vmatpush2.msra.mxu0 0.0
        %1079 = vmatprep.subr.mxu0 0.0
        %1080 = vmatpush2.msra.mxu0 0.0
        %1081 = vmatprep.subr.mxu0 0.0
        %1082 = vmatpush2.msra.mxu0 0.0
        %1083 = vmatprep.subr.mxu0 0.0
        %1084 = vmatpush2.msra.mxu0 0.0
        %1085 = vmatprep.subr.mxu0 0.0
        %1086 = vmatpush2.msra.mxu0 0.0
        %1087 = vmatprep.subr.mxu0 0.0
        %1088 = vmatpush2.msra.mxu0 0.0
        %1089 = vmatprep.subr.mxu0 0.0
        %1090 = vmatpush2.msra.mxu0 0.0
        %1091 = vmatprep.subr.mxu0 0.0
        %1092 = vmatpush2.msra.mxu0 0.0
        %1093 = vmatprep.mubr.f32.mxu0 0.0
        %1094 = vmatmul.mubr.f32.gmra.mxu0 %v1024
        %v1095 = vpop.f32.mrf.mxu0
        %v1096 = vadd.f32 0.0, %v1095
        %v1097 = vpop.f32.mrf.mxu0
        %1098 = vmatprep.mubr.f32.mxu0 0.0
        %1099 = vmatmul.mubr.f32.gmra.mxu0 %v1027
        %v1100 = vpop.f32.mrf.mxu0
        %v1101 = vadd.f32 0.0, %v1100
        %v1102 = vpop.f32.mrf.mxu0
        %1103 = vdwg.mxu0
        %v1104 = vld [vmem:[#allocation2 + $0xf0] sm:$0xff]
        %v1105 = vld [vmem:[#allocation2 + $0xf8] sm:$0xff]
        %v1107 = vsel %vm465, %v1096, 0
        %v1110 = vsel %vm465, %v1101, 0
        %1112 = vmatprep.subr.mxu0 0.0
        %1113 = vmatpush1.msra.mxu0 0.0
        %1114 = vmatprep.subr.mxu0 0.0
        %1115 = vmatpush1.msra.mxu0 0.0
        %1116 = vmatprep.subr.mxu0 0.0
        %1117 = vmatpush1.msra.mxu0 0.0
        %1118 = vmatprep.subr.mxu0 0.0
        %1119 = vmatpush1.msra.mxu0 0.0
        %1120 = vmatprep.subr.mxu0 0.0
        %1121 = vmatpush1.msra.mxu0 0.0
        %1122 = vmatprep.subr.mxu0 0.0
        %1123 = vmatpush1.msra.mxu0 0.0
        %1124 = vmatprep.subr.mxu0 0.0
        %1125 = vmatpush1.msra.mxu0 0.0
        %1126 = vmatprep.subr.mxu0 0.0
        %1127 = vmatpush1.msra.mxu0 0.0
        %1128 = vmatprep.subr.mxu0 0.0
        %1129 = vmatpush1.msra.mxu0 0.0
        %1130 = vmatprep.subr.mxu0 0.0
        %1131 = vmatpush1.msra.mxu0 0.0
        %1132 = vmatprep.subr.mxu0 0.0
        %1133 = vmatpush1.msra.mxu0 0.0
        %1134 = vmatprep.subr.mxu0 0.0
        %1135 = vmatpush1.msra.mxu0 0.0
        %1136 = vmatprep.subr.mxu0 0.0
        %1137 = vmatpush1.msra.mxu0 0.0
        %1138 = vmatprep.subr.mxu0 0.0
        %1139 = vmatpush1.msra.mxu0 0.0
        %1140 = vmatprep.subr.mxu0 0.0
        %1141 = vmatpush1.msra.mxu0 %v1105
        %1142 = vmatprep.subr.mxu0 0.0
        %1143 = vmatpush1.msra.mxu0 %v1104
        %1144 = vmatprep.subr.mxu0 0.0
        %1145 = vmatpush2.msra.mxu0 0.0
        %1146 = vmatprep.subr.mxu0 0.0
        %1147 = vmatpush2.msra.mxu0 0.0
        %1148 = vmatprep.subr.mxu0 0.0
        %1149 = vmatpush2.msra.mxu0 0.0
        %1150 = vmatprep.subr.mxu0 0.0
        %1151 = vmatpush2.msra.mxu0 0.0
        %1152 = vmatprep.subr.mxu0 0.0
        %1153 = vmatpush2.msra.mxu0 0.0
        %1154 = vmatprep.subr.mxu0 0.0
        %1155 = vmatpush2.msra.mxu0 0.0
        %1156 = vmatprep.subr.mxu0 0.0
        %1157 = vmatpush2.msra.mxu0 0.0
        %1158 = vmatprep.subr.mxu0 0.0
        %1159 = vmatpush2.msra.mxu0 0.0
        %1160 = vmatprep.subr.mxu0 0.0
        %1161 = vmatpush2.msra.mxu0 0.0
        %1162 = vmatprep.subr.mxu0 0.0
        %1163 = vmatpush2.msra.mxu0 0.0
        %1164 = vmatprep.subr.mxu0 0.0
        %1165 = vmatpush2.msra.mxu0 0.0
        %1166 = vmatprep.subr.mxu0 0.0
        %1167 = vmatpush2.msra.mxu0 0.0
        %1168 = vmatprep.subr.mxu0 0.0
        %1169 = vmatpush2.msra.mxu0 0.0
        %1170 = vmatprep.subr.mxu0 0.0
        %1171 = vmatpush2.msra.mxu0 0.0
        %1172 = vmatprep.subr.mxu0 0.0
        %1173 = vmatpush2.msra.mxu0 0.0
        %1174 = vmatprep.subr.mxu0 0.0
        %1175 = vmatpush2.msra.mxu0 0.0
        %1176 = vmatprep.mubr.f32.mxu0 0.0
        %1177 = vmatmul.mubr.f32.gmra.mxu0 %v1107
        %v1178 = vpop.f32.mrf.mxu0
        %v1179 = vadd.f32 0.0, %v1178
        %v1180 = vpop.f32.mrf.mxu0
        %1181 = vmatprep.mubr.f32.mxu0 0.0
        %1182 = vmatmul.mubr.f32.gmra.mxu0 %v1110
        %v1183 = vpop.f32.mrf.mxu0
        %v1184 = vadd.f32 0.0, %v1183
        %v1185 = vpop.f32.mrf.mxu0
        %1186 = vdwg.mxu0
        %v1188 = vsel %vm465, %v650, 0
        %v1191 = vsel %vm465, %v655, 0
        %1193 = vmatprep.subr.mxu0 0.0
        %1194 = vmatpush1.msra.mxu0 0.0
        %1195 = vmatprep.subr.mxu0 0.0
        %1196 = vmatpush1.msra.mxu0 0.0
        %1197 = vmatprep.subr.mxu0 0.0
        %1198 = vmatpush1.msra.mxu0 0.0
        %1199 = vmatprep.subr.mxu0 0.0
        %1200 = vmatpush1.msra.mxu0 0.0
        %1201 = vmatprep.subr.mxu0 0.0
        %1202 = vmatpush1.msra.mxu0 0.0
        %1203 = vmatprep.subr.mxu0 0.0
        %1204 = vmatpush1.msra.mxu0 0.0
        %1205 = vmatprep.subr.mxu0 0.0
        %1206 = vmatpush1.msra.mxu0 0.0
        %1207 = vmatprep.subr.mxu0 0.0
        %1208 = vmatpush1.msra.mxu0 0.0
        %1209 = vmatprep.subr.mxu0 0.0
        %1210 = vmatpush1.msra.mxu0 0.0
        %1211 = vmatprep.subr.mxu0 0.0
        %1212 = vmatpush1.msra.mxu0 0.0
        %1213 = vmatprep.subr.mxu0 0.0
        %1214 = vmatpush1.msra.mxu0 0.0
        %1215 = vmatprep.subr.mxu0 0.0
        %1216 = vmatpush1.msra.mxu0 0.0
        %1217 = vmatprep.subr.mxu0 0.0
        %1218 = vmatpush1.msra.mxu0 0.0
        %1219 = vmatprep.subr.mxu0 0.0
        %1220 = vmatpush1.msra.mxu0 0.0
        %1221 = vmatprep.subr.mxu0 0.0
        %1222 = vmatpush1.msra.mxu0 %v659
        %1223 = vmatprep.subr.mxu0 0.0
        %1224 = vmatpush1.msra.mxu0 %v658
        %1225 = vmatprep.subr.mxu0 0.0
        %1226 = vmatpush2.msra.mxu0 0.0
        %1227 = vmatprep.subr.mxu0 0.0
        %1228 = vmatpush2.msra.mxu0 0.0
        %1229 = vmatprep.subr.mxu0 0.0
        %1230 = vmatpush2.msra.mxu0 0.0
        %1231 = vmatprep.subr.mxu0 0.0
        %1232 = vmatpush2.msra.mxu0 0.0
        %1233 = vmatprep.subr.mxu0 0.0
        %1234 = vmatpush2.msra.mxu0 0.0
        %1235 = vmatprep.subr.mxu0 0.0
        %1236 = vmatpush2.msra.mxu0 0.0
        %1237 = vmatprep.subr.mxu0 0.0
        %1238 = vmatpush2.msra.mxu0 0.0
        %1239 = vmatprep.subr.mxu0 0.0
        %1240 = vmatpush2.msra.mxu0 0.0
        %1241 = vmatprep.subr.mxu0 0.0
        %1242 = vmatpush2.msra.mxu0 0.0
        %1243 = vmatprep.subr.mxu0 0.0
        %1244 = vmatpush2.msra.mxu0 0.0
        %1245 = vmatprep.subr.mxu0 0.0
        %1246 = vmatpush2.msra.mxu0 0.0
        %1247 = vmatprep.subr.mxu0 0.0
        %1248 = vmatpush2.msra.mxu0 0.0
        %1249 = vmatprep.subr.mxu0 0.0
        %1250 = vmatpush2.msra.mxu0 0.0
        %1251 = vmatprep.subr.mxu0 0.0
        %1252 = vmatpush2.msra.mxu0 0.0
        %1253 = vmatprep.subr.mxu0 0.0
        %1254 = vmatpush2.msra.mxu0 0.0
        %1255 = vmatprep.subr.mxu0 0.0
        %1256 = vmatpush2.msra.mxu0 0.0
        %1257 = vmatprep.mubr.f32.mxu0 0.0
        %1258 = vmatmul.mubr.f32.gmra.mxu0 %v1188
        %v1259 = vpop.f32.mrf.mxu0
        %v1260 = vadd.f32 %v1179, %v1259
        %v1261 = vpop.f32.mrf.mxu0
        %1262 = vmatprep.mubr.f32.mxu0 0.0
        %1263 = vmatmul.mubr.f32.gmra.mxu0 %v1191
        %v1264 = vpop.f32.mrf.mxu0
        %v1265 = vadd.f32 %v1184, %v1264
        %v1266 = vpop.f32.mrf.mxu0
        %1267 = vdwg.mxu0
        %v1268 = vld [vmem:[%s2 + $0x6] sm:$0x1]
        %v1269 = vlaneseq
        %v1270 = vshrl.u32 %v1269, 7
        %v1271 = vsub.s32 0, %v1270
        %v1272 = vrot.slane %v1268, %v1271
        %v1273 = vadd.f32 %v1260, %v1272
        %v1274 = vadd.f32 %v1265, %v1272
        %v1275 = vadd.f32 %v204, %v1273
        %v1276 = vadd.f32 %v205, %v1274
        %v1277 = vld [vmem:[%s2 + $0x7] sm:$0x1]
        %v1278 = vld [vmem:[%s2 + $0x8] sm:$0x1]
        %v1279 = vsel %vm215, %v1275, 0.0
        %1280 = vadd.xlane.f32.xlu0 %v1279
        %v1281 = vpop.xlane.xlu0 %1280
        %v1282 = vsel %vm215, %v1276, 0.0
        %1283 = vadd.xlane.f32.xlu0 %v1282
        %v1284 = vpop.xlane.xlu0 %1283
        %v1285 = vrcp.pop 32.0
        %v1286 = vmul.f32 %v1281, %v1285
        %v1287 = vmul.f32 %v1284, %v1285
        %v1288 = vsub.f32 %v1275, %v1286
        %v1289 = vsub.f32 %v1276, %v1287
        %v1290 = vmul.f32 %v1288, %v1288
        %v1291 = vmul.f32 %v1289, %v1289
        %v1292 = vsel %vm215, %v1290, 0.0
        %1293 = vadd.xlane.f32.xlu0 %v1292
        %v1294 = vpop.xlane.xlu0 %1293
        %v1295 = vsel %vm215, %v1291, 0.0
        %1296 = vadd.xlane.f32.xlu0 %v1295
        %v1297 = vpop.xlane.xlu0 %1296
        %v1298 = vmul.f32 %v1294, %v1285
        %v1299 = vmul.f32 %v1297, %v1285
        %v1300 = vadd.f32 %v1298, 1e-05
        %v1301 = vadd.f32 %v1299, 1e-05
        %v1302 = vrsqrt.pop %v1300
        %v1303 = vrsqrt.pop %v1301
        %v1304 = vmul.f32 %v1288, %v1302
        %v1305 = vmul.f32 %v1289, %v1303
        %v1306 = vlaneseq
        %v1307 = vshrl.u32 %v1306, 7
        %v1308 = vsub.s32 0, %v1307
        %v1309 = vrot.slane %v1277, %v1308
        %v1310 = vmul.f32 %v1304, %v1309
        %v1311 = vmul.f32 %v1305, %v1309
        %v1312 = vlaneseq
        %v1313 = vshrl.u32 %v1312, 7
        %v1314 = vsub.s32 0, %v1313
        %v1315 = vrot.slane %v1278, %v1314
        %v1316 = vadd.f32 %v1310, %v1315
        %v1317 = vadd.f32 %v1311, %v1315
        %v1318 = vld [vmem:[#allocation2 + $0x100] sm:$0xff]
        %v1319 = vld [vmem:[#allocation2 + $0x108] sm:$0xff]
        %v1320 = vld [vmem:[#allocation2 + $0x110] sm:$0xff]
        %v1321 = vld [vmem:[#allocation2 + $0x118] sm:$0xff]
        %v1322 = vld [vmem:[%s2 + $0x9] sm:$0x1]
        %v1323 = vlaneseq
        %v1324 = vshrl.u32 %v1323, 7
        %v1325 = vsub.s32 0, %v1324
        %v1326 = vrot.slane %v1322, %v1325
        %v1328 = vsel %vm215, %v1316, 0
        %v1331 = vsel %vm215, %v1317, 0
        %1333 = vmatprep.subr.mxu0 0.0
        %1334 = vmatpush1.msra.mxu0 0.0
        %1335 = vmatprep.subr.mxu0 0.0
        %1336 = vmatpush1.msra.mxu0 0.0
        %1337 = vmatprep.subr.mxu0 0.0
        %1338 = vmatpush1.msra.mxu0 0.0
        %1339 = vmatprep.subr.mxu0 0.0
        %1340 = vmatpush1.msra.mxu0 0.0
        %1341 = vmatprep.subr.mxu0 0.0
        %1342 = vmatpush1.msra.mxu0 0.0
        %1343 = vmatprep.subr.mxu0 0.0
        %1344 = vmatpush1.msra.mxu0 0.0
        %1345 = vmatprep.subr.mxu0 0.0
        %1346 = vmatpush1.msra.mxu0 0.0
        %1347 = vmatprep.subr.mxu0 0.0
        %1348 = vmatpush1.msra.mxu0 0.0
        %1349 = vmatprep.subr.mxu0 0.0
        %1350 = vmatpush1.msra.mxu0 0.0
        %1351 = vmatprep.subr.mxu0 0.0
        %1352 = vmatpush1.msra.mxu0 0.0
        %1353 = vmatprep.subr.mxu0 0.0
        %1354 = vmatpush1.msra.mxu0 0.0
        %1355 = vmatprep.subr.mxu0 0.0
        %1356 = vmatpush1.msra.mxu0 0.0
        %1357 = vmatprep.subr.mxu0 0.0
        %1358 = vmatpush1.msra.mxu0 %v1321
        %1359 = vmatprep.subr.mxu0 0.0
        %1360 = vmatpush1.msra.mxu0 %v1320
        %1361 = vmatprep.subr.mxu0 0.0
        %1362 = vmatpush1.msra.mxu0 %v1319
        %1363 = vmatprep.subr.mxu0 0.0
        %1364 = vmatpush1.msra.mxu0 %v1318
        %1365 = vmatprep.subr.mxu0 0.0
        %1366 = vmatpush2.msra.mxu0 0.0
        %1367 = vmatprep.subr.mxu0 0.0
        %1368 = vmatpush2.msra.mxu0 0.0
        %1369 = vmatprep.subr.mxu0 0.0
        %1370 = vmatpush2.msra.mxu0 0.0
        %1371 = vmatprep.subr.mxu0 0.0
        %1372 = vmatpush2.msra.mxu0 0.0
        %1373 = vmatprep.subr.mxu0 0.0
        %1374 = vmatpush2.msra.mxu0 0.0
        %1375 = vmatprep.subr.mxu0 0.0
        %1376 = vmatpush2.msra.mxu0 0.0
        %1377 = vmatprep.subr.mxu0 0.0
        %1378 = vmatpush2.msra.mxu0 0.0
        %1379 = vmatprep.subr.mxu0 0.0
        %1380 = vmatpush2.msra.mxu0 0.0
        %1381 = vmatprep.subr.mxu0 0.0
        %1382 = vmatpush2.msra.mxu0 0.0
        %1383 = vmatprep.subr.mxu0 0.0
        %1384 = vmatpush2.msra.mxu0 0.0
        %1385 = vmatprep.subr.mxu0 0.0
        %1386 = vmatpush2.msra.mxu0 0.0
        %1387 = vmatprep.subr.mxu0 0.0
        %1388 = vmatpush2.msra.mxu0 0.0
        %1389 = vmatprep.subr.mxu0 0.0
        %1390 = vmatpush2.msra.mxu0 0.0
        %1391 = vmatprep.subr.mxu0 0.0
        %1392 = vmatpush2.msra.mxu0 0.0
        %1393 = vmatprep.subr.mxu0 0.0
        %1394 = vmatpush2.msra.mxu0 0.0
        %1395 = vmatprep.subr.mxu0 0.0
        %1396 = vmatpush2.msra.mxu0 0.0
        %1397 = vmatprep.mubr.f32.mxu0 0.0
        %1398 = vmatmul.mubr.f32.gmra.mxu0 %v1328
        %v1399 = vpop.f32.mrf.mxu0
        %v1400 = vadd.f32 %v1326, %v1399
        %v1401 = vpop.f32.mrf.mxu0
        %1402 = vmatprep.mubr.f32.mxu0 0.0
        %1403 = vmatmul.mubr.f32.gmra.mxu0 %v1331
        %v1404 = vpop.f32.mrf.mxu0
        %v1405 = vadd.f32 %v1326, %v1404
        %v1406 = vpop.f32.mrf.mxu0
        %1407 = vdwg.mxu0
        %v1408 = vmax.f32 %v1400, 0.0
        %v1409 = vmax.f32 %v1405, 0.0
        %v1410 = vld [vmem:[#allocation2 + $0x120] sm:$0xff]
        %v1411 = vld [vmem:[#allocation2 + $0x128] sm:$0xff]
        %v1412 = vld [vmem:[#allocation2 + $0x130] sm:$0xff]
        %v1413 = vld [vmem:[#allocation2 + $0x138] sm:$0xff]
        %v1414 = vld [vmem:[#allocation2 + $0x140] sm:$0xff]
        %v1415 = vld [vmem:[#allocation2 + $0x148] sm:$0xff]
        %v1416 = vld [vmem:[#allocation2 + $0x150] sm:$0xff]
        %v1417 = vld [vmem:[#allocation2 + $0x158] sm:$0xff]
        %v1418 = vld [vmem:[%s2 + $0xa] sm:$0x1]
        %v1419 = vlaneseq
        %v1420 = vshrl.u32 %v1419, 7
        %v1421 = vsub.s32 0, %v1420
        %v1422 = vrot.slane %v1418, %v1421
        %vm1423 = vcmask 523264
        %v1425 = vsel %vm1423, %v1408, 0
        %v1428 = vsel %vm1423, %v1409, 0
        %1430 = vmatprep.subr.mxu0 0.0
        %1431 = vmatpush1.msra.mxu0 0.0
        %1432 = vmatprep.subr.mxu0 0.0
        %1433 = vmatpush1.msra.mxu0 0.0
        %1434 = vmatprep.subr.mxu0 0.0
        %1435 = vmatpush1.msra.mxu0 0.0
        %1436 = vmatprep.subr.mxu0 0.0
        %1437 = vmatpush1.msra.mxu0 0.0
        %1438 = vmatprep.subr.mxu0 0.0
        %1439 = vmatpush1.msra.mxu0 0.0
        %1440 = vmatprep.subr.mxu0 0.0
        %1441 = vmatpush1.msra.mxu0 0.0
        %1442 = vmatprep.subr.mxu0 0.0
        %1443 = vmatpush1.msra.mxu0 0.0
        %1444 = vmatprep.subr.mxu0 0.0
        %1445 = vmatpush1.msra.mxu0 0.0
        %1446 = vmatprep.subr.mxu0 0.0
        %1447 = vmatpush1.msra.mxu0 %v1417
        %1448 = vmatprep.subr.mxu0 0.0
        %1449 = vmatpush1.msra.mxu0 %v1416
        %1450 = vmatprep.subr.mxu0 0.0
        %1451 = vmatpush1.msra.mxu0 %v1415
        %1452 = vmatprep.subr.mxu0 0.0
        %1453 = vmatpush1.msra.mxu0 %v1414
        %1454 = vmatprep.subr.mxu0 0.0
        %1455 = vmatpush1.msra.mxu0 %v1413
        %1456 = vmatprep.subr.mxu0 0.0
        %1457 = vmatpush1.msra.mxu0 %v1412
        %1458 = vmatprep.subr.mxu0 0.0
        %1459 = vmatpush1.msra.mxu0 %v1411
        %1460 = vmatprep.subr.mxu0 0.0
        %1461 = vmatpush1.msra.mxu0 %v1410
        %1462 = vmatprep.subr.mxu0 0.0
        %1463 = vmatpush2.msra.mxu0 0.0
        %1464 = vmatprep.subr.mxu0 0.0
        %1465 = vmatpush2.msra.mxu0 0.0
        %1466 = vmatprep.subr.mxu0 0.0
        %1467 = vmatpush2.msra.mxu0 0.0
        %1468 = vmatprep.subr.mxu0 0.0
        %1469 = vmatpush2.msra.mxu0 0.0
        %1470 = vmatprep.subr.mxu0 0.0
        %1471 = vmatpush2.msra.mxu0 0.0
        %1472 = vmatprep.subr.mxu0 0.0
        %1473 = vmatpush2.msra.mxu0 0.0
        %1474 = vmatprep.subr.mxu0 0.0
        %1475 = vmatpush2.msra.mxu0 0.0
        %1476 = vmatprep.subr.mxu0 0.0
        %1477 = vmatpush2.msra.mxu0 0.0
        %1478 = vmatprep.subr.mxu0 0.0
        %1479 = vmatpush2.msra.mxu0 0.0
        %1480 = vmatprep.subr.mxu0 0.0
        %1481 = vmatpush2.msra.mxu0 0.0
        %1482 = vmatprep.subr.mxu0 0.0
        %1483 = vmatpush2.msra.mxu0 0.0
        %1484 = vmatprep.subr.mxu0 0.0
        %1485 = vmatpush2.msra.mxu0 0.0
        %1486 = vmatprep.subr.mxu0 0.0
        %1487 = vmatpush2.msra.mxu0 0.0
        %1488 = vmatprep.subr.mxu0 0.0
        %1489 = vmatpush2.msra.mxu0 0.0
        %1490 = vmatprep.subr.mxu0 0.0
        %1491 = vmatpush2.msra.mxu0 0.0
        %1492 = vmatprep.subr.mxu0 0.0
        %1493 = vmatpush2.msra.mxu0 0.0
        %1494 = vmatprep.mubr.f32.mxu0 0.0
        %1495 = vmatmul.mubr.f32.gmra.mxu0 %v1425
        %v1496 = vpop.f32.mrf.mxu0
        %v1497 = vadd.f32 %v1422, %v1496
        %v1498 = vpop.f32.mrf.mxu0
        %1499 = vmatprep.mubr.f32.mxu0 0.0
        %1500 = vmatmul.mubr.f32.gmra.mxu0 %v1428
        %v1501 = vpop.f32.mrf.mxu0
        %v1502 = vadd.f32 %v1422, %v1501
        %v1503 = vpop.f32.mrf.mxu0
        %1504 = vdwg.mxu0
        %v1505 = vadd.f32 %v1316, %v1497
        %v1506 = vadd.f32 %v1317, %v1502
        %v1507 = vld [vmem:[%s2 + $0xb] sm:$0x1]
        %v1508 = vld [vmem:[%s2 + $0xc] sm:$0x1]
        %v1509 = vsel %vm215, %v1505, 0.0
        %1510 = vadd.xlane.f32.xlu0 %v1509
        %v1511 = vpop.xlane.xlu0 %1510
        %v1512 = vsel %vm215, %v1506, 0.0
        %1513 = vadd.xlane.f32.xlu0 %v1512
        %v1514 = vpop.xlane.xlu0 %1513
        %v1515 = vmul.f32 %v1511, %v1285
        %v1516 = vmul.f32 %v1514, %v1285
        %v1517 = vsub.f32 %v1505, %v1515
        %v1518 = vsub.f32 %v1506, %v1516
        %v1519 = vmul.f32 %v1517, %v1517
        %v1520 = vmul.f32 %v1518, %v1518
        %v1521 = vsel %vm215, %v1519, 0.0
        %1522 = vadd.xlane.f32.xlu0 %v1521
        %v1523 = vpop.xlane.xlu0 %1522
        %v1524 = vsel %vm215, %v1520, 0.0
        %1525 = vadd.xlane.f32.xlu0 %v1524
        %v1526 = vpop.xlane.xlu0 %1525
        %v1527 = vmul.f32 %v1523, %v1285
        %v1528 = vmul.f32 %v1526, %v1285
        %v1529 = vadd.f32 %v1527, 1e-05
        %v1530 = vadd.f32 %v1528, 1e-05
        %v1531 = vrsqrt.pop %v1529
        %v1532 = vrsqrt.pop %v1530
        %v1533 = vmul.f32 %v1517, %v1531
        %v1534 = vmul.f32 %v1518, %v1532
        %v1535 = vlaneseq
        %v1536 = vshrl.u32 %v1535, 7
        %v1537 = vsub.s32 0, %v1536
        %v1538 = vrot.slane %v1507, %v1537
        %v1539 = vmul.f32 %v1533, %v1538
        %v1540 = vmul.f32 %v1534, %v1538
        %v1541 = vlaneseq
        %v1542 = vshrl.u32 %v1541, 7
        %v1543 = vsub.s32 0, %v1542
        %v1544 = vrot.slane %v1508, %v1543
        %v1545 = vadd.f32 %v1539, %v1544
        %v1546 = vadd.f32 %v1540, %v1544
        %v1547 = vld [vmem:[#allocation2 + $0x160] sm:$0xff]
        %v1548 = vld [vmem:[#allocation2 + $0x168] sm:$0xff]
        %v1549 = vmul.f32 %v1545, %v1547
        %v1550 = vmul.f32 %v1546, %v1548
        %v1551 = vsel %vm215, %v1549, 0.0
        %1552 = vadd.xlane.f32.xlu0 %v1551
        %v1553 = vpop.xlane.xlu0 %1552
        %v1554 = vsel %vm215, %v1550, 0.0
        %1555 = vadd.xlane.f32.xlu0 %v1554
        %v1556 = vpop.xlane.xlu0 %1555
        %v1557 = vld [vmem:[#allocation2 + $0x1c0] sm:$0xff]
        %v1558 = vld [vmem:[#allocation2 + $0x1c8] sm:$0xff]
        %v1559 = vadd.f32 %v1553, %v1557
        %v1560 = vadd.f32 %v1556, %v1558
        %v1561 = vld [vmem:[#allocation2 + $0x170] sm:$0xff]
        %v1562 = vld [vmem:[#allocation2 + $0x178] sm:$0xff]
        %1564 = vset.pattern.permute.xlu0 0
        %1565 = vperm.xlu0 %1564, %v1559
        %v1566 = vpop.permute.xlu0 %1565
        %1569 = vset.pattern.permute.xlu0 0
        %1570 = vperm.xlu0 %1569, %v1560
        %v1571 = vpop.permute.xlu0 %1570
        %v1573 = vmul.f32 %v1566, %v1561
        %v1574 = vmul.f32 %v1571, %v1562
        %v1576 = vsel %vm465, 1.0, 0
        %1578 = vmatprep.subr.mxu0 0.0
        %1579 = vmatpush1.msra.mxu0 0.0
        %1580 = vmatprep.subr.mxu0 0.0
        %1581 = vmatpush1.msra.mxu0 0.0
        %1582 = vmatprep.subr.mxu0 0.0
        %1583 = vmatpush1.msra.mxu0 0.0
        %1584 = vmatprep.subr.mxu0 0.0
        %1585 = vmatpush1.msra.mxu0 0.0
        %1586 = vmatprep.subr.mxu0 0.0
        %1587 = vmatpush1.msra.mxu0 0.0
        %1588 = vmatprep.subr.mxu0 0.0
        %1589 = vmatpush1.msra.mxu0 0.0
        %1590 = vmatprep.subr.mxu0 0.0
        %1591 = vmatpush1.msra.mxu0 0.0
        %1592 = vmatprep.subr.mxu0 0.0
        %1593 = vmatpush1.msra.mxu0 0.0
        %1594 = vmatprep.subr.mxu0 0.0
        %1595 = vmatpush1.msra.mxu0 0.0
        %1596 = vmatprep.subr.mxu0 0.0
        %1597 = vmatpush1.msra.mxu0 0.0
        %1598 = vmatprep.subr.mxu0 0.0
        %1599 = vmatpush1.msra.mxu0 0.0
        %1600 = vmatprep.subr.mxu0 0.0
        %1601 = vmatpush1.msra.mxu0 0.0
        %1602 = vmatprep.subr.mxu0 0.0
        %1603 = vmatpush1.msra.mxu0 0.0
        %1604 = vmatprep.subr.mxu0 0.0
        %1605 = vmatpush1.msra.mxu0 0.0
        %1606 = vmatprep.subr.mxu0 0.0
        %1607 = vmatpush1.msra.mxu0 %v1574
        %1608 = vmatprep.subr.mxu0 0.0
        %1609 = vmatpush1.msra.mxu0 %v1573
        %1610 = vmatprep.subr.mxu0 0.0
        %1611 = vmatpush2.msra.mxu0 0.0
        %1612 = vmatprep.subr.mxu0 0.0
        %1613 = vmatpush2.msra.mxu0 0.0
        %1614 = vmatprep.subr.mxu0 0.0
        %1615 = vmatpush2.msra.mxu0 0.0
        %1616 = vmatprep.subr.mxu0 0.0
        %1617 = vmatpush2.msra.mxu0 0.0
        %1618 = vmatprep.subr.mxu0 0.0
        %1619 = vmatpush2.msra.mxu0 0.0
        %1620 = vmatprep.subr.mxu0 0.0
        %1621 = vmatpush2.msra.mxu0 0.0
        %1622 = vmatprep.subr.mxu0 0.0
        %1623 = vmatpush2.msra.mxu0 0.0
        %1624 = vmatprep.subr.mxu0 0.0
        %1625 = vmatpush2.msra.mxu0 0.0
        %1626 = vmatprep.subr.mxu0 0.0
        %1627 = vmatpush2.msra.mxu0 0.0
        %1628 = vmatprep.subr.mxu0 0.0
        %1629 = vmatpush2.msra.mxu0 0.0
        %1630 = vmatprep.subr.mxu0 0.0
        %1631 = vmatpush2.msra.mxu0 0.0
        %1632 = vmatprep.subr.mxu0 0.0
        %1633 = vmatpush2.msra.mxu0 0.0
        %1634 = vmatprep.subr.mxu0 0.0
        %1635 = vmatpush2.msra.mxu0 0.0
        %1636 = vmatprep.subr.mxu0 0.0
        %1637 = vmatpush2.msra.mxu0 0.0
        %1638 = vmatprep.subr.mxu0 0.0
        %1639 = vmatpush2.msra.mxu0 0.0
        %1640 = vmatprep.subr.mxu0 0.0
        %1641 = vmatpush2.msra.mxu0 0.0
        %1642 = vmatprep.mubr.f32.mxu0 0.0
        %1643 = vmatmul.mubr.f32.gmra.mxu0 %v1576
        %v1644 = vpop.f32.mrf.mxu0
        %v1645 = vadd.f32 0.0, %v1644
        %v1646 = vpop.f32.mrf.mxu0
        %1647 = vdwg.mxu0
        %v1648 = vld [vmem:[#allocation2 + $0x180] sm:$0xff]
        %v1649 = vld [vmem:[#allocation2 + $0x188] sm:$0xff]
        %v1650 = vld [vmem:[#allocation2 + $0x190] sm:$0xff]
        %vm1651 = vcmask 195584
        %v1653 = vsel %vm1651, %v1645, 0
        %1655 = vmatprep.subr.mxu0 0.0
        %1656 = vmatpush1.msra.mxu0 0.0
        %1657 = vmatprep.subr.mxu0 0.0
        %1658 = vmatpush1.msra.mxu0 0.0
        %1659 = vmatprep.subr.mxu0 0.0
        %1660 = vmatpush1.msra.mxu0 0.0
        %1661 = vmatprep.subr.mxu0 0.0
        %1662 = vmatpush1.msra.mxu0 0.0
        %1663 = vmatprep.subr.mxu0 0.0
        %1664 = vmatpush1.msra.mxu0 0.0
        %1665 = vmatprep.subr.mxu0 0.0
        %1666 = vmatpush1.msra.mxu0 0.0
        %1667 = vmatprep.subr.mxu0 0.0
        %1668 = vmatpush1.msra.mxu0 0.0
        %1669 = vmatprep.subr.mxu0 0.0
        %1670 = vmatpush1.msra.mxu0 0.0
        %1671 = vmatprep.subr.mxu0 0.0
        %1672 = vmatpush1.msra.mxu0 0.0
        %1673 = vmatprep.subr.mxu0 0.0
        %1674 = vmatpush1.msra.mxu0 0.0
        %1675 = vmatprep.subr.mxu0 0.0
        %1676 = vmatpush1.msra.mxu0 0.0
        %1677 = vmatprep.subr.mxu0 0.0
        %1678 = vmatpush1.msra.mxu0 0.0
        %1679 = vmatprep.subr.mxu0 0.0
        %1680 = vmatpush1.msra.mxu0 0.0
        %1681 = vmatprep.subr.mxu0 0.0
        %1682 = vmatpush1.msra.mxu0 %v1650
        %1683 = vmatprep.subr.mxu0 0.0
        %1684 = vmatpush1.msra.mxu0 %v1649
        %1685 = vmatprep.subr.mxu0 0.0
        %1686 = vmatpush1.msra.mxu0 %v1648
        %1687 = vmatprep.subr.mxu0 0.0
        %1688 = vmatpush2.msra.mxu0 0.0
        %1689 = vmatprep.subr.mxu0 0.0
        %1690 = vmatpush2.msra.mxu0 0.0
        %1691 = vmatprep.subr.mxu0 0.0
        %1692 = vmatpush2.msra.mxu0 0.0
        %1693 = vmatprep.subr.mxu0 0.0
        %1694 = vmatpush2.msra.mxu0 0.0
        %1695 = vmatprep.subr.mxu0 0.0
        %1696 = vmatpush2.msra.mxu0 0.0
        %1697 = vmatprep.subr.mxu0 0.0
        %1698 = vmatpush2.msra.mxu0 0.0
        %1699 = vmatprep.subr.mxu0 0.0
        %1700 = vmatpush2.msra.mxu0 0.0
        %1701 = vmatprep.subr.mxu0 0.0
        %1702 = vmatpush2.msra.mxu0 0.0
        %1703 = vmatprep.subr.mxu0 0.0
        %1704 = vmatpush2.msra.mxu0 0.0
        %1705 = vmatprep.subr.mxu0 0.0
        %1706 = vmatpush2.msra.mxu0 0.0
        %1707 = vmatprep.subr.mxu0 0.0
        %1708 = vmatpush2.msra.mxu0 0.0
        %1709 = vmatprep.subr.mxu0 0.0
        %1710 = vmatpush2.msra.mxu0 0.0
        %1711 = vmatprep.subr.mxu0 0.0
        %1712 = vmatpush2.msra.mxu0 0.0
        %1713 = vmatprep.subr.mxu0 0.0
        %1714 = vmatpush2.msra.mxu0 0.0
        %1715 = vmatprep.subr.mxu0 0.0
        %1716 = vmatpush2.msra.mxu0 0.0
        %1717 = vmatprep.subr.mxu0 0.0
        %1718 = vmatpush2.msra.mxu0 0.0
        %1719 = vmatprep.mubr.f32.mxu0 0.0
        %1720 = vmatmul.mubr.f32.gmra.mxu0 %v1653
        %v1721 = vpop.f32.mrf.mxu0
        %v1722 = vadd.f32 0.0, %v1721
        %v1723 = vpop.f32.mrf.mxu0
        %1724 = vdwg.mxu0
        %v1725 = vld [vmem:[#allocation2 + $0x198] sm:$0xff]
        %v1726 = vld [vmem:[#allocation2 + $0x1a0] sm:$0xff]
        %v1727 = vld [vmem:[%s2 + $0xd] sm:$0x1]
        %v1729 = vsel %vm465, %v1722, 0
        %1731 = vmatprep.subr.mxu0 0.0
        %1732 = vmatpush1.msra.mxu0 0.0
        %1733 = vmatprep.subr.mxu0 0.0
        %1734 = vmatpush1.msra.mxu0 0.0
        %1735 = vmatprep.subr.mxu0 0.0
        %1736 = vmatpush1.msra.mxu0 0.0
        %1737 = vmatprep.subr.mxu0 0.0
        %1738 = vmatpush1.msra.mxu0 0.0
        %1739 = vmatprep.subr.mxu0 0.0
        %1740 = vmatpush1.msra.mxu0 0.0
        %1741 = vmatprep.subr.mxu0 0.0
        %1742 = vmatpush1.msra.mxu0 0.0
        %1743 = vmatprep.subr.mxu0 0.0
        %1744 = vmatpush1.msra.mxu0 0.0
        %1745 = vmatprep.subr.mxu0 0.0
        %1746 = vmatpush1.msra.mxu0 0.0
        %1747 = vmatprep.subr.mxu0 0.0
        %1748 = vmatpush1.msra.mxu0 0.0
        %1749 = vmatprep.subr.mxu0 0.0
        %1750 = vmatpush1.msra.mxu0 0.0
        %1751 = vmatprep.subr.mxu0 0.0
        %1752 = vmatpush1.msra.mxu0 0.0
        %1753 = vmatprep.subr.mxu0 0.0
        %1754 = vmatpush1.msra.mxu0 0.0
        %1755 = vmatprep.subr.mxu0 0.0
        %1756 = vmatpush1.msra.mxu0 0.0
        %1757 = vmatprep.subr.mxu0 0.0
        %1758 = vmatpush1.msra.mxu0 0.0
        %1759 = vmatprep.subr.mxu0 0.0
        %1760 = vmatpush1.msra.mxu0 %v1726
        %1761 = vmatprep.subr.mxu0 0.0
        %1762 = vmatpush1.msra.mxu0 %v1725
        %1763 = vmatprep.subr.mxu0 0.0
        %1764 = vmatpush2.msra.mxu0 0.0
        %1765 = vmatprep.subr.mxu0 0.0
        %1766 = vmatpush2.msra.mxu0 0.0
        %1767 = vmatprep.subr.mxu0 0.0
        %1768 = vmatpush2.msra.mxu0 0.0
        %1769 = vmatprep.subr.mxu0 0.0
        %1770 = vmatpush2.msra.mxu0 0.0
        %1771 = vmatprep.subr.mxu0 0.0
        %1772 = vmatpush2.msra.mxu0 0.0
        %1773 = vmatprep.subr.mxu0 0.0
        %1774 = vmatpush2.msra.mxu0 0.0
        %1775 = vmatprep.subr.mxu0 0.0
        %1776 = vmatpush2.msra.mxu0 0.0
        %1777 = vmatprep.subr.mxu0 0.0
        %1778 = vmatpush2.msra.mxu0 0.0
        %1779 = vmatprep.subr.mxu0 0.0
        %1780 = vmatpush2.msra.mxu0 0.0
        %1781 = vmatprep.subr.mxu0 0.0
        %1782 = vmatpush2.msra.mxu0 0.0
        %1783 = vmatprep.subr.mxu0 0.0
        %1784 = vmatpush2.msra.mxu0 0.0
        %1785 = vmatprep.subr.mxu0 0.0
        %1786 = vmatpush2.msra.mxu0 0.0
        %1787 = vmatprep.subr.mxu0 0.0
        %1788 = vmatpush2.msra.mxu0 0.0
        %1789 = vmatprep.subr.mxu0 0.0
        %1790 = vmatpush2.msra.mxu0 0.0
        %1791 = vmatprep.subr.mxu0 0.0
        %1792 = vmatpush2.msra.mxu0 0.0
        %1793 = vmatprep.subr.mxu0 0.0
        %1794 = vmatpush2.msra.mxu0 0.0
        %1795 = vmatprep.mubr.f32.mxu0 0.0
        %1796 = vmatmul.mubr.f32.gmra.mxu0 %v1729
        %v1797 = vpop.f32.mrf.mxu0
        %v1798 = vadd.f32 %v1727, %v1797
        %v1799 = vpop.f32.mrf.mxu0
        %1800 = vdwg.mxu0
        %v1801 = vld [vmem:[%s2 + $0xe] sm:$0x1]
        %v1802 = vmul.f32 %v1801, 0.999995
        %v1803 = vmul.f32 %v1798, %v1802
        %v1804 = vld [vmem:[%s2 + $0xf] sm:$0x1]
        %v1805 = vadd.f32 %v1803, %v1804
        %v1806 = vmax.f32 %v1805, 0.0
        %v1807 = vld [vmem:[#allocation2 + $0x1a8] sm:$0xff]
        %v1808 = vld [vmem:[#allocation2 + $0x1b0] sm:$0xff]
        %v1809 = vld [vmem:[#allocation2 + $0x1b8] sm:$0xff]
        %v1810 = vld [vmem:[%s2 + $0x10] sm:$0x1]
        %v1812 = vsel %vm1651, %v1806, 0
        %1814 = vmatprep.subr.mxu0 0.0
        %1815 = vmatpush1.msra.mxu0 0.0
        %1816 = vmatprep.subr.mxu0 0.0
        %1817 = vmatpush1.msra.mxu0 0.0
        %1818 = vmatprep.subr.mxu0 0.0
        %1819 = vmatpush1.msra.mxu0 0.0
        %1820 = vmatprep.subr.mxu0 0.0
        %1821 = vmatpush1.msra.mxu0 0.0
        %1822 = vmatprep.subr.mxu0 0.0
        %1823 = vmatpush1.msra.mxu0 0.0
        %1824 = vmatprep.subr.mxu0 0.0
        %1825 = vmatpush1.msra.mxu0 0.0
        %1826 = vmatprep.subr.mxu0 0.0
        %1827 = vmatpush1.msra.mxu0 0.0
        %1828 = vmatprep.subr.mxu0 0.0
        %1829 = vmatpush1.msra.mxu0 0.0
        %1830 = vmatprep.subr.mxu0 0.0
        %1831 = vmatpush1.msra.mxu0 0.0
        %1832 = vmatprep.subr.mxu0 0.0
        %1833 = vmatpush1.msra.mxu0 0.0
        %1834 = vmatprep.subr.mxu0 0.0
        %1835 = vmatpush1.msra.mxu0 0.0
        %1836 = vmatprep.subr.mxu0 0.0
        %1837 = vmatpush1.msra.mxu0 0.0
        %1838 = vmatprep.subr.mxu0 0.0
        %1839 = vmatpush1.msra.mxu0 0.0
        %1840 = vmatprep.subr.mxu0 0.0
        %1841 = vmatpush1.msra.mxu0 %v1809
        %1842 = vmatprep.subr.mxu0 0.0
        %1843 = vmatpush1.msra.mxu0 %v1808
        %1844 = vmatprep.subr.mxu0 0.0
        %1845 = vmatpush1.msra.mxu0 %v1807
        %1846 = vmatprep.subr.mxu0 0.0
        %1847 = vmatpush2.msra.mxu0 0.0
        %1848 = vmatprep.subr.mxu0 0.0
        %1849 = vmatpush2.msra.mxu0 0.0
        %1850 = vmatprep.subr.mxu0 0.0
        %1851 = vmatpush2.msra.mxu0 0.0
        %1852 = vmatprep.subr.mxu0 0.0
        %1853 = vmatpush2.msra.mxu0 0.0
        %1854 = vmatprep.subr.mxu0 0.0
        %1855 = vmatpush2.msra.mxu0 0.0
        %1856 = vmatprep.subr.mxu0 0.0
        %1857 = vmatpush2.msra.mxu0 0.0
        %1858 = vmatprep.subr.mxu0 0.0
        %1859 = vmatpush2.msra.mxu0 0.0
        %1860 = vmatprep.subr.mxu0 0.0
        %1861 = vmatpush2.msra.mxu0 0.0
        %1862 = vmatprep.subr.mxu0 0.0
        %1863 = vmatpush2.msra.mxu0 0.0
        %1864 = vmatprep.subr.mxu0 0.0
        %1865 = vmatpush2.msra.mxu0 0.0
        %1866 = vmatprep.subr.mxu0 0.0
        %1867 = vmatpush2.msra.mxu0 0.0
        %1868 = vmatprep.subr.mxu0 0.0
        %1869 = vmatpush2.msra.mxu0 0.0
        %1870 = vmatprep.subr.mxu0 0.0
        %1871 = vmatpush2.msra.mxu0 0.0
        %1872 = vmatprep.subr.mxu0 0.0
        %1873 = vmatpush2.msra.mxu0 0.0
        %1874 = vmatprep.subr.mxu0 0.0
        %1875 = vmatpush2.msra.mxu0 0.0
        %1876 = vmatprep.subr.mxu0 0.0
        %1877 = vmatpush2.msra.mxu0 0.0
        %1878 = vmatprep.mubr.f32.mxu0 0.0
        %1879 = vmatmul.mubr.f32.gmra.mxu0 %v1812
        %v1880 = vpop.f32.mrf.mxu0
        %v1881 = vadd.f32 %v1810, %v1880
        %v1882 = vpop.f32.mrf.mxu0
        %1883 = vdwg.mxu0
        %1884 = vst [vmem:[%s185] sm:$0xff] 0.0
        %vm1885 = vcmask 257026
        %1886 = vst.msk [vmem:[%s185 - $0x2] sm:$0xc] %vm1885, %v1545
        %vm1887 = vcmask 122880
        %1888 = vst.msk [vmem:[%s185 + $0x2] sm:$0x1] %vm1887, %v1722
        %vm1889 = vcmask 24576
        %1890 = vst.msk [vmem:[%s185 + $0x3] sm:$0x1] %vm1889, %v1881
        %p1891 = scmp.lt.s32.totalorder %s15, 1
        %s1892 = scalar_select %p1891, %s15, 1
        %s1893 = smul.addr %s1892, 8
        %s1894 = scalar_lea.vmem %s3, %s1893
        // Predicated region
        $region37: #{compass_forward.1} parent=31 // pred_check
          %p1895 = pneg %p101
        $region38: #{compass_forward.1} parent=31 // pred_check_branch
          %1897 = sbr.rel (%p1895) target = $region40
        $region39: #{compass_forward.1} parent=31 // pred_region
          _
        $region40: #{compass_forward.1} parent=31 // pred_fallthru
          _
      $region32: #{compass_forward.1} parent=5 // pred_fallthru
        _
      %p1898 = scmp.le.s32.totalorder 2, %s10
      // Predicated region
      $region41: #{compass_forward.1} parent=5 // pred_check
        %p1899 = pneg %p1898
      $region42: #{compass_forward.1} parent=5 // pred_check_branch
        %1901 = sbr.rel (%p1899) target = $region44
      $region43: #{compass_forward.1} parent=5 // pred_region
        %s1902 = ssub.s32 %s10, 2
        // Predicated region
        $region45: #{compass_forward.1} parent=43 // pred_check
          %p1903 = pneg %p107
        $region46: #{compass_forward.1} parent=43 // pred_check_branch
          %1905 = sbr.rel (%p1903) target = $region48
        $region47: #{compass_forward.1} parent=43 // pred_region
          %p1906 = scmp.lt.s32.totalorder %s16, 1
          %s1907 = scalar_select %p1906, %s16, 1
          %s1908 = smul.addr %s1907, 8
          %s1909 = scalar_lea.vmem %s3, %s1908
        $region48: #{compass_forward.1} parent=43 // pred_fallthru
          _
      $region44: #{compass_forward.1} parent=5 // pred_fallthru
        _
    $region6: #{compass_forward.1} parent=1 // loop_footer
      %s14 = sadd.s32 1, %s10
    $region7: #{compass_forward.1} parent=1 // loop_footer_branch
      %9 = sbr.rel target = $region3
    $region8: #{compass_forward.1} parent=1 // loop_exit
      _
    %1910 = vsyncpa [#allocation3], 1
    %s1911 = scalar_lea.sflag [#allocation3], 1
    %1912 = vsyncpa %s1911, 1

</llo_original>
